<compile_context>
chip_gen: v5e
topology: v5e:2x2
jax: 0.10.0
libtpu: 0.0.40
codegen_flags: <defaults>
</compile_context>

<pallas_src>
import functools

import jax
import jax.numpy as jnp
from jax.experimental import pallas as pl
from jax.experimental.pallas import tpu as pltpu

K = 5        # conv kernel size
PAD = 2      # conv padding ("same")
CIN = 2      # input channels
CH = 32      # hidden channels
NCLS = 2     # output classes

XHALO = 8    # x window halo per side (>= PAD + HHALO, multiple of 8 for alignment)
HHALO = 4    # h1 halo per side (>= PAD, chosen so TLh = TL + 8 stays 8-aligned)


def _round_up(x, m):
    return (x + m - 1) // m * m


def resnet1d_kernel(x_ref, w1_ref, b1_ref, w2_ref, b2_ref, fcw_ref, fcb_ref,
                    o_ref, acc_ref, *, l_true):
    # x_ref  : (1, TB, TLx, CIN) f32   raw NLC window, halo = XHALO per side
    # w1_ref : (K*CIN, CH) f32         b1_ref : (1, CH) f32
    # w2_ref : (K, CH, CH) bf16        b2_ref : (1, CH) f32
    # fcw_ref: (CH, NCLS) f32          fcb_ref: (1, NCLS) f32
    # o_ref  : (TB, NCLS) f32          acc_ref: (TB, CH) f32 pool accumulator
    li = pl.program_id(1)
    n_l = pl.num_programs(1)

    _, TB, TLx, _ = x_ref.shape
    TL = TLx - 2 * XHALO
    TLh = TL + 2 * HHALO

    @pl.when(li == 0)
    def _init():
        acc_ref[...] = jnp.zeros_like(acc_ref)

    # ---- conv1: build K*CIN tap columns in VMEM, one shallow f32 matmul ----
    xw = x_ref[0]                                              # (TB, TLx, CIN)
    off1 = XHALO - HHALO - PAD                                 # = 2
    xcol = jnp.concatenate(
        [xw[:, off1 + k: off1 + k + TLh, :] for k in range(K)],
        axis=-1)                                               # (TB, TLh, K*CIN)
    h1e = jnp.dot(xcol.reshape(TB * TLh, K * CIN), w1_ref[...],
                  preferred_element_type=jnp.float32)
    h1e = jnp.maximum(h1e + b1_ref[...], 0.0).reshape(TB, TLh, CH)

    # zero h1 rows whose global position is outside the real sequence [0, l_true)
    r = jax.lax.broadcasted_iota(jnp.int32, (1, TLh, 1), 1)
    pos = li * TL + r - HHALO
    h1e = jnp.where((pos >= 0) & (pos < l_true), h1e, 0.0)

    # ---- conv2: 5 accumulated (rows, 32)@(32, 32) bf16 matmuls (no concat) ----
    h1e_b = h1e.astype(w2_ref.dtype)
    acc2 = h1e[:, HHALO:HHALO + TL, :].reshape(TB * TL, CH) + b2_ref[...]
    off2 = HHALO - PAD                                         # = 2
    for k in range(K):
        lhs = h1e_b[:, off2 + k: off2 + k + TL, :].reshape(TB * TL, CH)
        acc2 = acc2 + jnp.dot(lhs, w2_ref[k],
                              preferred_element_type=jnp.float32)
    h2 = jnp.maximum(acc2, 0.0).reshape(TB, TL, CH)

    # mask L-padding rows so they don't pollute the pool; fused running avg-pool
    rc = jax.lax.broadcasted_iota(jnp.int32, (1, TL, 1), 1)
    h2 = jnp.where(li * TL + rc < l_true, h2, 0.0)
    acc_ref[...] += jnp.sum(h2, axis=1)                        # (TB, CH)

    # ---- finalize: mean over L, then FC ----
    @pl.when(li == n_l - 1)
    def _finalize():
        pooled = acc_ref[...] * (1.0 / l_true)
        o_ref[...] = (jnp.dot(pooled, fcw_ref[...],
                              preferred_element_type=jnp.float32)
                      + fcb_ref[...])


def resnet1d_forward(x_ncl, params, *, tile_l=256, tile_b=16):
    """x_ncl: (B, CIN, L) float32 (PyTorch NCL layout). Returns (B, NCLS)."""
    w1, b1, w2, b2, fcw, fcb = params
    B, _, L = x_ncl.shape

    # ---- batch tiling: multiples of 8; >=2 tiles when B spans more than one ----
    TB = min(tile_b, _round_up(B, 8))
    TB = max(8, (TB // 8) * 8)
    B_pad = _round_up(B, TB)
    if B_pad // TB == 1 and TB > 8 and _round_up(B, 8) > 8:
        TB = 8                                     # v7x megacore: >=2 batch tiles
        B_pad = _round_up(B, TB)

    # ---- L tiling: multiples of 8 ----
    TL = min(tile_l, _round_up(L, 8))
    TL = max(8, (TL // 8) * 8)
    L_pad = _round_up(L, TL)
    n_lt = L_pad // TL
    TLx = TL + 2 * XHALO

    # ---- layout glue (single cheap pass): NCL -> NLC, pad, overlapping windows ----
    x_nlc = jnp.transpose(x_ncl, (0, 2, 1)).astype(jnp.float32)     # (B, L, CIN)
    x_p = jnp.pad(x_nlc, ((0, B_pad - B), (XHALO, L_pad - L + XHALO), (0, 0)))
    x_tiles = jnp.stack(
        [x_p[:, t * TL: t * TL + TLx, :] for t in range(n_lt)],
        axis=0)                                                     # (n_lt, B_pad, TLx, CIN)

    # ---- weights: tap-major layouts matching the in-kernel concat order ----
    w1_col = jnp.transpose(w1, (2, 1, 0)).reshape(K * CIN, CH).astype(jnp.float32)
    w2_tap = jnp.transpose(w2, (2, 1, 0)).astype(jnp.bfloat16)      # (K, CH, CH)
    fcw_k = jnp.transpose(fcw, (1, 0)).astype(jnp.float32)          # (CH, NCLS)
    b1_k = b1.reshape(1, CH).astype(jnp.float32)
    b2_k = b2.reshape(1, CH).astype(jnp.float32)
    fcb_k = fcb.reshape(1, NCLS).astype(jnp.float32)

    kernel = functools.partial(resnet1d_kernel, l_true=L)
    bcast2 = lambda bi, li: (0, 0)
    bcast3 = lambda bi, li: (0, 0, 0)

    out = pl.pallas_call(
        kernel,
        out_shape=jax.ShapeDtypeStruct((B_pad, NCLS), jnp.float32),
        grid_spec=pltpu.PrefetchScalarGridSpec(
            num_scalar_prefetch=0,
            grid=(B_pad // TB, n_lt),
            in_specs=[
                pl.BlockSpec((1, TB, TLx, CIN), lambda bi, li: (li, bi, 0, 0)),
                pl.BlockSpec((K * CIN, CH), bcast2),
                pl.BlockSpec((1, CH), bcast2),
                pl.BlockSpec((K, CH, CH), bcast3),
                pl.BlockSpec((1, CH), bcast2),
                pl.BlockSpec((CH, NCLS), bcast2),
                pl.BlockSpec((1, NCLS), bcast2),
            ],
            out_specs=pl.BlockSpec((TB, NCLS), lambda bi, li: (bi, 0)),
            scratch_shapes=[pltpu.VMEM((TB, CH), jnp.float32)],
        ),
        compiler_params=pltpu.CompilerParams(
            dimension_semantics=("parallel", "arbitrary"),
            vmem_limit_bytes=48 * 1024 * 1024,
        ),
    )(x_tiles, w1_col, b1_k, w2_tap, b2_k, fcw_k, fcb_k)
    return out[:B]


def ref_forward(x_ncl, params):
    """Pure-JAX f32 reference mirroring the PyTorch forward (NCL layout)."""
    w1, b1, w2, b2, fcw, fcb = params

    def conv1d(x, w, b):
        L = x.shape[-1]
        xp = jnp.pad(x, ((0, 0), (0, 0), (PAD, PAD)))
        out = jnp.zeros((x.shape[0], w.shape[0], L), jnp.float32)
        for k in range(K):
            out = out + jnp.einsum('bcl,oc->bol', xp[:, :, k:k + L], w[:, :, k])
        return out + b[None, :, None]

    h1 = jax.nn.relu(conv1d(x_ncl, w1, b1))
    h2 = jax.nn.relu(conv1d(h1, w2, b2) + h1)
    pooled = h2.mean(axis=-1)                  # AdaptiveAvgPool1d(1) + squeeze(-1)
    return pooled @ fcw.T + fcb[None, :]


def init_params(key):
    k1, k2, k3, k4, k5, k6 = jax.random.split(key, 6)
    w1 = 0.1 * jax.random.normal(k1, (CH, CIN, K), jnp.float32)   # Conv1d(2, 32, 5)
    b1 = 0.1 * jax.random.normal(k2, (CH,), jnp.float32)
    w2 = 0.1 * jax.random.normal(k3, (CH, CH, K), jnp.float32)    # Conv1d(32, 32, 5)
    b2 = 0.1 * jax.random.normal(k4, (CH,), jnp.float32)
    fcw = 0.1 * jax.random.normal(k5, (NCLS, CH), jnp.float32)    # Linear(32, 2)
    fcb = 0.1 * jax.random.normal(k6, (NCLS,), jnp.float32)
    return (w1, b1, w2, b2, fcw, fcb)


if __name__ == "__main__":
    key = jax.random.PRNGKey(0)
    kx, kp, kx2 = jax.random.split(key, 3)
    params = init_params(kp)

    # Module-sized test (PyTorch NCL input): batch=2, channels=2, length=16.
    B, L = 2, 16
    x = jax.random.normal(kx, (B, CIN, L), jnp.float32)
    out = jax.block_until_ready(resnet1d_forward(x, params))
    ref = ref_forward(x, params)
    assert out.shape == (B, NCLS)
    # conv2 uses bf16 MXU operands (f32 accumulation) -> bf16-level tolerance.
    assert jnp.allclose(out, ref, atol=2e-2, rtol=2e-2), (out, ref)

    # Larger test exercising batch tiling (2 tiles), 2 L tiles, halo + padding masks.
    B2, L2 = 12, 300
    x2 = jax.random.normal(kx2, (B2, CIN, L2), jnp.float32)
    out2 = jax.block_until_ready(resnet1d_forward(x2, params))
    ref2 = ref_forward(x2, params)
    assert out2.shape == (B2, NCLS)
    assert jnp.allclose(out2, ref2, atol=2e-2, rtol=2e-2), (out2, ref2)

    print("KERNEL_OK")
</pallas_src>

<mosaic_0001>
module attributes {stable_mosaic.version = 11 : i64} {
  func.func @resnet1d_kernel(%arg0: i32, %arg1: i32, %arg2: memref<1x8x32x2xf32, #tpu.memory_space<vmem>>, %arg3: memref<10x32xf32, #tpu.memory_space<vmem>>, %arg4: memref<1x32xf32, #tpu.memory_space<vmem>>, %arg5: memref<5x32x32xbf16, #tpu.memory_space<vmem>>, %arg6: memref<1x32xf32, #tpu.memory_space<vmem>>, %arg7: memref<32x2xf32, #tpu.memory_space<vmem>>, %arg8: memref<1x2xf32, #tpu.memory_space<vmem>>, %arg9: memref<8x2xf32, #tpu.memory_space<vmem>>, %arg10: memref<8x32xf32, #tpu.memory_space<vmem>>) attributes {dimension_semantics = [#tpu.dimension_semantics<parallel>, #tpu.dimension_semantics<arbitrary>], iteration_bounds = array<i64: 1, 1>, scalar_prefetch = 0 : i64, scratch_operands = 1 : i64, tpu.core_type = #tpu.core_type<tc>, window_params = [{transform_indices = @transform_0, window_bounds = array<i64: 1, 8, 32, 2>}, {pipeline_mode = #tpu.pipeline_mode<synchronous>, transform_indices = @transform_1, window_bounds = array<i64: 10, 32>}, {pipeline_mode = #tpu.pipeline_mode<synchronous>, transform_indices = @transform_2, window_bounds = array<i64: 1, 32>}, {pipeline_mode = #tpu.pipeline_mode<synchronous>, transform_indices = @transform_3, window_bounds = array<i64: 5, 32, 32>}, {pipeline_mode = #tpu.pipeline_mode<synchronous>, transform_indices = @transform_4, window_bounds = array<i64: 1, 32>}, {pipeline_mode = #tpu.pipeline_mode<synchronous>, transform_indices = @transform_5, window_bounds = array<i64: 32, 2>}, {pipeline_mode = #tpu.pipeline_mode<synchronous>, transform_indices = @transform_6, window_bounds = array<i64: 1, 2>}, {transform_indices = @transform_7, window_bounds = array<i64: 8, 2>}]} {
    %c0_i32 = arith.constant 0 : i32
    %0 = arith.cmpi eq, %arg1, %c0_i32 : i32
    %1 = arith.extui %0 : i1 to i32
    %c0_i32_0 = arith.constant 0 : i32
    %2 = arith.cmpi ne, %1, %c0_i32_0 : i32
    scf.if %2 {
      %cst_41 = arith.constant 0.000000e+00 : f32
      %91 = vector.broadcast %cst_41 : f32 to vector<8x32xf32>
      %c0_42 = arith.constant 0 : index
      %c0_43 = arith.constant 0 : index
      %92 = vector.load %arg10[%c0_42, %c0_43] : memref<8x32xf32, #tpu.memory_space<vmem>>, vector<8x32xf32>
      tpu.vector_store %arg10[%c0_42, %c0_43], %91 {strides = array<i32>} : memref<8x32xf32, #tpu.memory_space<vmem>>, vector<8x32xf32>,
    } else {
    }
    %c0 = arith.constant 0 : index
    %c0_1 = arith.constant 0 : index
    %c0_2 = arith.constant 0 : index
    %c0_3 = arith.constant 0 : index
    %3 = vector.load %arg2[%c0, %c0_1, %c0_2, %c0_3] : memref<1x8x32x2xf32, #tpu.memory_space<vmem>>, vector<1x8x32x2xf32>
    %4 = vector.shape_cast %3 : vector<1x8x32x2xf32> to vector<8x32x2xf32>
    %5 = vector.extract_strided_slice %4 {offsets = [0, 2, 0], sizes = [8, 24, 2], strides = [1, 1, 1]} : vector<8x32x2xf32> to vector<8x24x2xf32>
    %6 = vector.extract_strided_slice %4 {offsets = [0, 3, 0], sizes = [8, 24, 2], strides = [1, 1, 1]} : vector<8x32x2xf32> to vector<8x24x2xf32>
    %7 = vector.extract_strided_slice %4 {offsets = [0, 4, 0], sizes = [8, 24, 2], strides = [1, 1, 1]} : vector<8x32x2xf32> to vector<8x24x2xf32>
    %8 = vector.extract_strided_slice %4 {offsets = [0, 5, 0], sizes = [8, 24, 2], strides = [1, 1, 1]} : vector<8x32x2xf32> to vector<8x24x2xf32>
    %9 = vector.extract_strided_slice %4 {offsets = [0, 6, 0], sizes = [8, 24, 2], strides = [1, 1, 1]} : vector<8x32x2xf32> to vector<8x24x2xf32>
    %10 = tpu.concatenate %5, %6, %7, %8, %9 in 2 : vector<8x24x2xf32>, vector<8x24x2xf32>, vector<8x24x2xf32>, vector<8x24x2xf32>, vector<8x24x2xf32> -> vector<8x24x10xf32>
    %11 = vector.shape_cast %10 : vector<8x24x10xf32> to vector<192x10xf32>
    %c0_4 = arith.constant 0 : index
    %c0_5 = arith.constant 0 : index
    %12 = vector.load %arg3[%c0_4, %c0_5] : memref<10x32xf32, #tpu.memory_space<vmem>>, vector<10x32xf32>
    %cst = arith.constant dense<0.000000e+00> : vector<192x32xf32>
    %13 = tpu.matmul %11, %12, %cst {dimension_numbers = #tpu.dot_dimension_numbers<[1], [0], [0], [1], [0, 0, 1, 1], [], []>} : vector<192x10xf32>, vector<10x32xf32>, vector<192x32xf32> -> vector<192x32xf32>
    %c0_6 = arith.constant 0 : index
    %c0_7 = arith.constant 0 : index
    %14 = vector.load %arg4[%c0_6, %c0_7] : memref<1x32xf32, #tpu.memory_space<vmem>>, vector<1x32xf32>
    %15 = vector.broadcast %14 : vector<1x32xf32> to vector<192x32xf32>
    %16 = arith.addf %13, %15 : vector<192x32xf32>
    %cst_8 = arith.constant 0.000000e+00 : f32
    %17 = vector.broadcast %cst_8 : f32 to vector<192x32xf32>
    %18 = arith.maximumf %16, %17 : vector<192x32xf32>
    %19 = vector.shape_cast %18 : vector<192x32xf32> to vector<8x24x32xf32>
    %20 = tpu.iota {dimensions = array<i32: 1>} : vector<1x24x1xi32>
    %c16_i32 = arith.constant 16 : i32
    %21 = arith.muli %arg1, %c16_i32 : i32
    %22 = vector.broadcast %21 : i32 to vector<1x24x1xi32>
    %23 = arith.addi %22, %20 : vector<1x24x1xi32>
    %c4_i32 = arith.constant 4 : i32
    %24 = vector.broadcast %c4_i32 : i32 to vector<1x24x1xi32>
    %25 = arith.subi %23, %24 : vector<1x24x1xi32>
    %c0_i32_9 = arith.constant 0 : i32
    %26 = vector.broadcast %c0_i32_9 : i32 to vector<1x24x1xi32>
    %27 = arith.cmpi sge, %25, %26 : vector<1x24x1xi32>
    %c16_i32_10 = arith.constant 16 : i32
    %28 = vector.broadcast %c16_i32_10 : i32 to vector<1x24x1xi32>
    %29 = arith.cmpi slt, %25, %28 : vector<1x24x1xi32>
    %30 = arith.andi %27, %29 : vector<1x24x1xi1>
    %cst_11 = arith.constant 0.000000e+00 : f32
    %31 = vector.shape_cast %30 : vector<1x24x1xi1> to vector<1x24x1xi1>
    %32 = vector.broadcast %31 : vector<1x24x1xi1> to vector<8x24x32xi1>
    %33 = vector.broadcast %cst_11 : f32 to vector<8x24x32xf32>
    %34 = arith.select %32, %19, %33 : vector<8x24x32xi1>, vector<8x24x32xf32>
    %35 = arith.truncf %34 : vector<8x24x32xf32> to vector<8x24x32xbf16>
    %36 = vector.extract_strided_slice %34 {offsets = [0, 4, 0], sizes = [8, 16, 32], strides = [1, 1, 1]} : vector<8x24x32xf32> to vector<8x16x32xf32>
    %37 = vector.shape_cast %36 : vector<8x16x32xf32> to vector<128x32xf32>
    %c0_12 = arith.constant 0 : index
    %c0_13 = arith.constant 0 : index
    %38 = vector.load %arg6[%c0_12, %c0_13] : memref<1x32xf32, #tpu.memory_space<vmem>>, vector<1x32xf32>
    %39 = vector.broadcast %38 : vector<1x32xf32> to vector<128x32xf32>
    %40 = arith.addf %37, %39 : vector<128x32xf32>
    %41 = vector.extract_strided_slice %35 {offsets = [0, 2, 0], sizes = [8, 16, 32], strides = [1, 1, 1]} : vector<8x24x32xbf16> to vector<8x16x32xbf16>
    %42 = vector.shape_cast %41 : vector<8x16x32xbf16> to vector<128x32xbf16>
    %c0_14 = arith.constant 0 : index
    %c0_15 = arith.constant 0 : index
    %c0_16 = arith.constant 0 : index
    %43 = vector.load %arg5[%c0_14, %c0_15, %c0_16] : memref<5x32x32xbf16, #tpu.memory_space<vmem>>, vector<1x32x32xbf16>
    %44 = vector.shape_cast %43 : vector<1x32x32xbf16> to vector<32x32xbf16>
    %cst_17 = arith.constant dense<0.000000e+00> : vector<128x32xf32>
    %45 = tpu.matmul %42, %44, %cst_17 {dimension_numbers = #tpu.dot_dimension_numbers<[1], [0], [0], [1], [0, 0, 1, 1], [], []>} : vector<128x32xbf16>, vector<32x32xbf16>, vector<128x32xf32> -> vector<128x32xf32>
    %46 = arith.addf %40, %45 : vector<128x32xf32>
    %47 = vector.extract_strided_slice %35 {offsets = [0, 3, 0], sizes = [8, 16, 32], strides = [1, 1, 1]} : vector<8x24x32xbf16> to vector<8x16x32xbf16>
    %48 = vector.shape_cast %47 : vector<8x16x32xbf16> to vector<128x32xbf16>
    %c1 = arith.constant 1 : index
    %c0_18 = arith.constant 0 : index
    %c0_19 = arith.constant 0 : index
    %49 = vector.load %arg5[%c1, %c0_18, %c0_19] : memref<5x32x32xbf16, #tpu.memory_space<vmem>>, vector<1x32x32xbf16>
    %50 = vector.shape_cast %49 : vector<1x32x32xbf16> to vector<32x32xbf16>
    %cst_20 = arith.constant dense<0.000000e+00> : vector<128x32xf32>
    %51 = tpu.matmul %48, %50, %cst_20 {dimension_numbers = #tpu.dot_dimension_numbers<[1], [0], [0], [1], [0, 0, 1, 1], [], []>} : vector<128x32xbf16>, vector<32x32xbf16>, vector<128x32xf32> -> vector<128x32xf32>
    %52 = arith.addf %46, %51 : vector<128x32xf32>
    %53 = vector.extract_strided_slice %35 {offsets = [0, 4, 0], sizes = [8, 16, 32], strides = [1, 1, 1]} : vector<8x24x32xbf16> to vector<8x16x32xbf16>
    %54 = vector.shape_cast %53 : vector<8x16x32xbf16> to vector<128x32xbf16>
    %c2 = arith.constant 2 : index
    %c0_21 = arith.constant 0 : index
    %c0_22 = arith.constant 0 : index
    %55 = vector.load %arg5[%c2, %c0_21, %c0_22] : memref<5x32x32xbf16, #tpu.memory_space<vmem>>, vector<1x32x32xbf16>
    %56 = vector.shape_cast %55 : vector<1x32x32xbf16> to vector<32x32xbf16>
    %cst_23 = arith.constant dense<0.000000e+00> : vector<128x32xf32>
    %57 = tpu.matmul %54, %56, %cst_23 {dimension_numbers = #tpu.dot_dimension_numbers<[1], [0], [0], [1], [0, 0, 1, 1], [], []>} : vector<128x32xbf16>, vector<32x32xbf16>, vector<128x32xf32> -> vector<128x32xf32>
    %58 = arith.addf %52, %57 : vector<128x32xf32>
    %59 = vector.extract_strided_slice %35 {offsets = [0, 5, 0], sizes = [8, 16, 32], strides = [1, 1, 1]} : vector<8x24x32xbf16> to vector<8x16x32xbf16>
    %60 = vector.shape_cast %59 : vector<8x16x32xbf16> to vector<128x32xbf16>
    %c3 = arith.constant 3 : index
    %c0_24 = arith.constant 0 : index
    %c0_25 = arith.constant 0 : index
    %61 = vector.load %arg5[%c3, %c0_24, %c0_25] : memref<5x32x32xbf16, #tpu.memory_space<vmem>>, vector<1x32x32xbf16>
    %62 = vector.shape_cast %61 : vector<1x32x32xbf16> to vector<32x32xbf16>
    %cst_26 = arith.constant dense<0.000000e+00> : vector<128x32xf32>
    %63 = tpu.matmul %60, %62, %cst_26 {dimension_numbers = #tpu.dot_dimension_numbers<[1], [0], [0], [1], [0, 0, 1, 1], [], []>} : vector<128x32xbf16>, vector<32x32xbf16>, vector<128x32xf32> -> vector<128x32xf32>
    %64 = arith.addf %58, %63 : vector<128x32xf32>
    %65 = vector.extract_strided_slice %35 {offsets = [0, 6, 0], sizes = [8, 16, 32], strides = [1, 1, 1]} : vector<8x24x32xbf16> to vector<8x16x32xbf16>
    %66 = vector.shape_cast %65 : vector<8x16x32xbf16> to vector<128x32xbf16>
    %c4 = arith.constant 4 : index
    %c0_27 = arith.constant 0 : index
    %c0_28 = arith.constant 0 : index
    %67 = vector.load %arg5[%c4, %c0_27, %c0_28] : memref<5x32x32xbf16, #tpu.memory_space<vmem>>, vector<1x32x32xbf16>
    %68 = vector.shape_cast %67 : vector<1x32x32xbf16> to vector<32x32xbf16>
    %cst_29 = arith.constant dense<0.000000e+00> : vector<128x32xf32>
    %69 = tpu.matmul %66, %68, %cst_29 {dimension_numbers = #tpu.dot_dimension_numbers<[1], [0], [0], [1], [0, 0, 1, 1], [], []>} : vector<128x32xbf16>, vector<32x32xbf16>, vector<128x32xf32> -> vector<128x32xf32>
    %70 = arith.addf %64, %69 : vector<128x32xf32>
    %cst_30 = arith.constant 0.000000e+00 : f32
    %71 = vector.broadcast %cst_30 : f32 to vector<128x32xf32>
    %72 = arith.maximumf %70, %71 : vector<128x32xf32>
    %73 = vector.shape_cast %72 : vector<128x32xf32> to vector<8x16x32xf32>
    %74 = tpu.iota {dimensions = array<i32: 1>} : vector<1x16x1xi32>
    %c16_i32_31 = arith.constant 16 : i32
    %75 = arith.muli %arg1, %c16_i32_31 : i32
    %76 = vector.broadcast %75 : i32 to vector<1x16x1xi32>
    %77 = arith.addi %76, %74 : vector<1x16x1xi32>
    %c16_i32_32 = arith.constant 16 : i32
    %78 = vector.broadcast %c16_i32_32 : i32 to vector<1x16x1xi32>
    %79 = arith.cmpi slt, %77, %78 : vector<1x16x1xi32>
    %cst_33 = arith.constant 0.000000e+00 : f32
    %80 = vector.shape_cast %79 : vector<1x16x1xi1> to vector<1x16x1xi1>
    %81 = vector.broadcast %80 : vector<1x16x1xi1> to vector<8x16x32xi1>
    %82 = vector.broadcast %cst_33 : f32 to vector<8x16x32xf32>
    %83 = arith.select %81, %73, %82 : vector<8x16x32xi1>, vector<8x16x32xf32>
    %c0_34 = arith.constant 0 : index
    %c0_35 = arith.constant 0 : index
    %84 = vector.load %arg10[%c0_34, %c0_35] : memref<8x32xf32, #tpu.memory_space<vmem>>, vector<8x32xf32>
    %cst_36 = arith.constant dense<0.000000e+00> : vector<8x32xf32>
    %85 = vector.multi_reduction <add>, %83, %cst_36 [1] : vector<8x16x32xf32> to vector<8x32xf32>
    %86 = arith.addf %84, %85 : vector<8x32xf32>
    %c0_37 = arith.constant 0 : index
    %c0_38 = arith.constant 0 : index
    %87 = vector.load %arg10[%c0_37, %c0_38] : memref<8x32xf32, #tpu.memory_space<vmem>>, vector<8x32xf32>
    tpu.vector_store %arg10[%c0_37, %c0_38], %86 {strides = array<i32>} : memref<8x32xf32, #tpu.memory_space<vmem>>, vector<8x32xf32>,
    %c0_i32_39 = arith.constant 0 : i32
    %88 = arith.cmpi eq, %arg1, %c0_i32_39 : i32
    %89 = arith.extui %88 : i1 to i32
    %c0_i32_40 = arith.constant 0 : i32
    %90 = arith.cmpi ne, %89, %c0_i32_40 : i32
    scf.if %90 {
      %c0_41 = arith.constant 0 : index
      %c0_42 = arith.constant 0 : index
      %91 = vector.load %arg10[%c0_41, %c0_42] : memref<8x32xf32, #tpu.memory_space<vmem>>, vector<8x32xf32>
      %cst_43 = arith.constant 6.250000e-02 : f32
      %92 = vector.broadcast %cst_43 : f32 to vector<8x32xf32>
      %93 = arith.mulf %91, %92 : vector<8x32xf32>
      %c0_44 = arith.constant 0 : index
      %c0_45 = arith.constant 0 : index
      %94 = vector.load %arg7[%c0_44, %c0_45] : memref<32x2xf32, #tpu.memory_space<vmem>>, vector<32x2xf32>
      %cst_46 = arith.constant dense<0.000000e+00> : vector<8x2xf32>
      %95 = tpu.matmul %93, %94, %cst_46 {dimension_numbers = #tpu.dot_dimension_numbers<[1], [0], [0], [1], [0, 0, 1, 1], [], []>} : vector<8x32xf32>, vector<32x2xf32>, vector<8x2xf32> -> vector<8x2xf32>
      %c0_47 = arith.constant 0 : index
      %c0_48 = arith.constant 0 : index
      %96 = vector.load %arg8[%c0_47, %c0_48] : memref<1x2xf32, #tpu.memory_space<vmem>>, vector<1x2xf32>
      %97 = vector.broadcast %96 : vector<1x2xf32> to vector<8x2xf32>
      %98 = arith.addf %95, %97 : vector<8x2xf32>
      %c0_49 = arith.constant 0 : index
      %c0_50 = arith.constant 0 : index
      %99 = vector.load %arg9[%c0_49, %c0_50] : memref<8x2xf32, #tpu.memory_space<vmem>>, vector<8x2xf32>
      tpu.vector_store %arg9[%c0_49, %c0_50], %98 {strides = array<i32>} : memref<8x2xf32, #tpu.memory_space<vmem>>, vector<8x2xf32>,
    } else {
    }
    return
  }
  func.func @transform_0(%arg0: i32, %arg1: i32) -> (i32, i32, i32, i32) {
    %c0_i32 = arith.constant 0 : i32
    %c0_i32_0 = arith.constant 0 : i32
    %c0_i32_1 = arith.constant 0 : i32
    return %arg1, %arg0, %c0_i32, %c0_i32_0 : i32, i32, i32, i32
  }
  func.func @transform_1(%arg0: i32, %arg1: i32) -> (i32, i32) {
    %c0_i32 = arith.constant 0 : i32
    %c0_i32_0 = arith.constant 0 : i32
    %c0_i32_1 = arith.constant 0 : i32
    return %c0_i32, %c0_i32_0 : i32, i32
  }
  func.func @transform_2(%arg0: i32, %arg1: i32) -> (i32, i32) {
    %c0_i32 = arith.constant 0 : i32
    %c0_i32_0 = arith.constant 0 : i32
    %c0_i32_1 = arith.constant 0 : i32
    return %c0_i32, %c0_i32_0 : i32, i32
  }
  func.func @transform_3(%arg0: i32, %arg1: i32) -> (i32, i32, i32) {
    %c0_i32 = arith.constant 0 : i32
    %c0_i32_0 = arith.constant 0 : i32
    %c0_i32_1 = arith.constant 0 : i32
    %c0_i32_2 = arith.constant 0 : i32
    return %c0_i32, %c0_i32_0, %c0_i32_1 : i32, i32, i32
  }
  func.func @transform_4(%arg0: i32, %arg1: i32) -> (i32, i32) {
    %c0_i32 = arith.constant 0 : i32
    %c0_i32_0 = arith.constant 0 : i32
    %c0_i32_1 = arith.constant 0 : i32
    return %c0_i32, %c0_i32_0 : i32, i32
  }
  func.func @transform_5(%arg0: i32, %arg1: i32) -> (i32, i32) {
    %c0_i32 = arith.constant 0 : i32
    %c0_i32_0 = arith.constant 0 : i32
    %c0_i32_1 = arith.constant 0 : i32
    return %c0_i32, %c0_i32_0 : i32, i32
  }
  func.func @transform_6(%arg0: i32, %arg1: i32) -> (i32, i32) {
    %c0_i32 = arith.constant 0 : i32
    %c0_i32_0 = arith.constant 0 : i32
    %c0_i32_1 = arith.constant 0 : i32
    return %c0_i32, %c0_i32_0 : i32, i32
  }
  func.func @transform_7(%arg0: i32, %arg1: i32) -> (i32, i32) {
    %c0_i32 = arith.constant 0 : i32
    %c0_i32_0 = arith.constant 0 : i32
    return %arg0, %c0_i32 : i32, i32
  }
}

</mosaic_0001>

<llo_original>
// kernel: tpu_custom_call.1
$region0: #{tpu_custom_call.1}
  #allocation0 [shape = 'u32[]', space=smem, size = 0x4, offset = 0x4, fixed_abs, tag = 'smem constant byte address 0x4 - core index']
  #allocation1 [shape = 'u32[72,128]{1,0:T(1,128)}', space=vmem, size = 0x9000, scoped, tag = 'internal scratch']
  #allocation2 [shape = 'f32[8,32]{1,0:T(8,128)}', space=vmem, size = 0x1000, scoped, tag = 'scratch operand']
  %s0 = inlined_call_operand.vmem [shape: f32[1,8,32,2], index: 0, kind: input, shape index: {}]
  %s1 = inlined_call_operand.vmem [shape: f32[10,32], index: 1, kind: input, shape index: {}]
  %s2 = inlined_call_operand.vmem [shape: f32[1,32], index: 2, kind: input, shape index: {}]
  %s3 = inlined_call_operand.vmem [shape: bf16[5,32,32], index: 3, kind: input, shape index: {}]
  %s4 = inlined_call_operand.vmem [shape: f32[1,32], index: 4, kind: input, shape index: {}]
  %s5 = inlined_call_operand.vmem [shape: f32[32,2], index: 5, kind: input, shape index: {}]
  %s6 = inlined_call_operand.vmem [shape: f32[1,2], index: 6, kind: input, shape index: {}]
  %s7 = inlined_call_operand.vmem [shape: f32[8,2], index: 7, kind: output, shape index: {}]
  %s8 = sld [smem:[#allocation0]]
  $region46: #{tpu_custom_call.1} parent=0
    _
  %s10 = ssub.s32 1, %s8
  %s11 = scalar_select 0, %s10, %s8
  // Predicated region
  $region2: #{tpu_custom_call.1} parent=0 // pred_check
    _
  $region3: #{tpu_custom_call.1} parent=0 // pred_check_branch
    %13 = sbr.rel (0) target = $region5
  $region4: #{tpu_custom_call.1} parent=0 // pred_region
    _
  $region5: #{tpu_custom_call.1} parent=0 // pred_fallthru
    _
  // Predicated region
  $region6: #{tpu_custom_call.1} parent=0 // pred_check
    _
  $region7: #{tpu_custom_call.1} parent=0 // pred_check_branch
    %15 = sbr.rel (0) target = $region9
  $region8: #{tpu_custom_call.1} parent=0 // pred_region
    _
  $region9: #{tpu_custom_call.1} parent=0 // pred_fallthru
    _
  // Predicated region
  $region10: #{tpu_custom_call.1} parent=0 // pred_check
    _
  $region11: #{tpu_custom_call.1} parent=0 // pred_check_branch
    %17 = sbr.rel (0) target = $region13
  $region12: #{tpu_custom_call.1} parent=0 // pred_region
    _
  $region13: #{tpu_custom_call.1} parent=0 // pred_fallthru
    _
  // Predicated region
  $region14: #{tpu_custom_call.1} parent=0 // pred_check
    _
  $region15: #{tpu_custom_call.1} parent=0 // pred_check_branch
    %19 = sbr.rel (0) target = $region17
  $region16: #{tpu_custom_call.1} parent=0 // pred_region
    _
  $region17: #{tpu_custom_call.1} parent=0 // pred_fallthru
    _
  // Predicated region
  $region18: #{tpu_custom_call.1} parent=0 // pred_check
    _
  $region19: #{tpu_custom_call.1} parent=0 // pred_check_branch
    %21 = sbr.rel (0) target = $region21
  $region20: #{tpu_custom_call.1} parent=0 // pred_region
    _
  $region21: #{tpu_custom_call.1} parent=0 // pred_fallthru
    _
  // Predicated region
  $region22: #{tpu_custom_call.1} parent=0 // pred_check
    _
  $region23: #{tpu_custom_call.1} parent=0 // pred_check_branch
    %23 = sbr.rel (0) target = $region25
  $region24: #{tpu_custom_call.1} parent=0 // pred_region
    _
  $region25: #{tpu_custom_call.1} parent=0 // pred_fallthru
    _
  // Predicated region
  $region26: #{tpu_custom_call.1} parent=0 // pred_check
    _
  $region27: #{tpu_custom_call.1} parent=0 // pred_check_branch
    %25 = sbr.rel (0) target = $region29
  $region28: #{tpu_custom_call.1} parent=0 // pred_region
    _
  $region29: #{tpu_custom_call.1} parent=0 // pred_fallthru
    _
  %p27 = scmp.eq.s32.totalorder 0, 0
  // Predicated region
  $region30: #{tpu_custom_call.1} parent=0 // pred_check
    %p28 = pneg %p27
  $region31: #{tpu_custom_call.1} parent=0 // pred_check_branch
    %30 = sbr.rel (%p28) target = $region33
  $region32: #{tpu_custom_call.1} parent=0 // pred_region
    %vm31 = vcmask 261120
    %32 = vst.msk [vmem:[#allocation2] sm:$0xff] %vm31, 0.0
  $region33: #{tpu_custom_call.1} parent=0 // pred_fallthru
    _
  %v33 = vld [vmem:[%s0] sm:$0xff]
  %v34 = vld [vmem:[%s0 + $0x8] sm:$0xff]
  %v35 = vld [vmem:[%s0 + $0x10] sm:$0xff]
  %v36 = vld [vmem:[%s0 + $0x18] sm:$0xff]
  %v37 = vld [vmem:[%s0 + $0x20] sm:$0xff]
  %v38 = vld [vmem:[%s0 + $0x28] sm:$0xff]
  %v39 = vld [vmem:[%s0 + $0x30] sm:$0xff]
  %v40 = vld [vmem:[%s0 + $0x38] sm:$0xff]
  %v41 = vld [vmem:[%s0 + $0x40] sm:$0xff]
  %v42 = vld [vmem:[%s0 + $0x48] sm:$0xff]
  %v43 = vld [vmem:[%s0 + $0x50] sm:$0xff]
  %v44 = vld [vmem:[%s0 + $0x58] sm:$0xff]
  %v45 = vld [vmem:[%s0 + $0x60] sm:$0xff]
  %v46 = vld [vmem:[%s0 + $0x68] sm:$0xff]
  %v47 = vld [vmem:[%s0 + $0x70] sm:$0xff]
  %v48 = vld [vmem:[%s0 + $0x78] sm:$0xff]
  %v49 = vld [vmem:[%s0 + $0x80] sm:$0xff]
  %v50 = vld [vmem:[%s0 + $0x88] sm:$0xff]
  %v51 = vld [vmem:[%s0 + $0x90] sm:$0xff]
  %v52 = vld [vmem:[%s0 + $0x98] sm:$0xff]
  %v53 = vld [vmem:[%s0 + $0xa0] sm:$0xff]
  %v54 = vld [vmem:[%s0 + $0xa8] sm:$0xff]
  %v55 = vld [vmem:[%s0 + $0xb0] sm:$0xff]
  %v56 = vld [vmem:[%s0 + $0xb8] sm:$0xff]
  %v57 = vld [vmem:[%s0 + $0xc0] sm:$0xff]
  %v58 = vld [vmem:[%s0 + $0xc8] sm:$0xff]
  %v59 = vld [vmem:[%s0 + $0xd0] sm:$0xff]
  %v60 = vld [vmem:[%s0 + $0xd8] sm:$0xff]
  %v61 = vld [vmem:[%s0 + $0xe0] sm:$0xff]
  %v62 = vld [vmem:[%s0 + $0xe8] sm:$0xff]
  %v63 = vld [vmem:[%s0 + $0xf0] sm:$0xff]
  %v64 = vld [vmem:[%s0 + $0xf8] sm:$0xff]
  %vm97 = vcmask 1046528
  %v98 = vrot.slane %v33, 1
  %v99 = vrot.slane %v34, 1
  %v100 = vsel %vm97, %v98, %v99
  %v101 = vrot.slane %v35, 1
  %v102 = vsel %vm97, %v99, %v101
  %v103 = vrot.slane %v36, 1
  %v104 = vsel %vm97, %v101, %v103
  %v105 = vrot.slane %v37, 1
  %v106 = vrot.slane %v38, 1
  %v107 = vsel %vm97, %v105, %v106
  %v108 = vrot.slane %v39, 1
  %v109 = vsel %vm97, %v106, %v108
  %v110 = vrot.slane %v40, 1
  %v111 = vsel %vm97, %v108, %v110
  %v112 = vrot.slane %v41, 1
  %v113 = vrot.slane %v42, 1
  %v114 = vsel %vm97, %v112, %v113
  %v115 = vrot.slane %v43, 1
  %v116 = vsel %vm97, %v113, %v115
  %v117 = vrot.slane %v44, 1
  %v118 = vsel %vm97, %v115, %v117
  %v119 = vrot.slane %v45, 1
  %v120 = vrot.slane %v46, 1
  %v121 = vsel %vm97, %v119, %v120
  %v122 = vrot.slane %v47, 1
  %v123 = vsel %vm97, %v120, %v122
  %v124 = vrot.slane %v48, 1
  %v125 = vsel %vm97, %v122, %v124
  %v126 = vrot.slane %v49, 1
  %v127 = vrot.slane %v50, 1
  %v128 = vsel %vm97, %v126, %v127
  %v129 = vrot.slane %v51, 1
  %v130 = vsel %vm97, %v127, %v129
  %v131 = vrot.slane %v52, 1
  %v132 = vsel %vm97, %v129, %v131
  %v133 = vrot.slane %v53, 1
  %v134 = vrot.slane %v54, 1
  %v135 = vsel %vm97, %v133, %v134
  %v136 = vrot.slane %v55, 1
  %v137 = vsel %vm97, %v134, %v136
  %v138 = vrot.slane %v56, 1
  %v139 = vsel %vm97, %v136, %v138
  %v140 = vrot.slane %v57, 1
  %v141 = vrot.slane %v58, 1
  %v142 = vsel %vm97, %v140, %v141
  %v143 = vrot.slane %v59, 1
  %v144 = vsel %vm97, %v141, %v143
  %v145 = vrot.slane %v60, 1
  %v146 = vsel %vm97, %v143, %v145
  %v147 = vrot.slane %v61, 1
  %v148 = vrot.slane %v62, 1
  %v149 = vsel %vm97, %v147, %v148
  %v150 = vrot.slane %v63, 1
  %v151 = vsel %vm97, %v148, %v150
  %v152 = vrot.slane %v64, 1
  %v153 = vsel %vm97, %v150, %v152
  %154 = vrot.lane.b32.xlu0 %v100, 2
  %v155 = vpop.permute.xlu0 %154
  %156 = vrot.lane.b32.xlu0 %v102, 2
  %v157 = vpop.permute.xlu0 %156
  %158 = vrot.lane.b32.xlu0 %v104, 2
  %v159 = vpop.permute.xlu0 %158
  %160 = vrot.lane.b32.xlu0 %v103, 2
  %v161 = vpop.permute.xlu0 %160
  %162 = vrot.lane.b32.xlu0 %v107, 2
  %v163 = vpop.permute.xlu0 %162
  %164 = vrot.lane.b32.xlu0 %v109, 2
  %v165 = vpop.permute.xlu0 %164
  %166 = vrot.lane.b32.xlu0 %v111, 2
  %v167 = vpop.permute.xlu0 %166
  %168 = vrot.lane.b32.xlu0 %v110, 2
  %v169 = vpop.permute.xlu0 %168
  %170 = vrot.lane.b32.xlu0 %v114, 2
  %v171 = vpop.permute.xlu0 %170
  %172 = vrot.lane.b32.xlu0 %v116, 2
  %v173 = vpop.permute.xlu0 %172
  %174 = vrot.lane.b32.xlu0 %v118, 2
  %v175 = vpop.permute.xlu0 %174
  %176 = vrot.lane.b32.xlu0 %v117, 2
  %v177 = vpop.permute.xlu0 %176
  %178 = vrot.lane.b32.xlu0 %v121, 2
  %v179 = vpop.permute.xlu0 %178
  %180 = vrot.lane.b32.xlu0 %v123, 2
  %v181 = vpop.permute.xlu0 %180
  %182 = vrot.lane.b32.xlu0 %v125, 2
  %v183 = vpop.permute.xlu0 %182
  %184 = vrot.lane.b32.xlu0 %v124, 2
  %v185 = vpop.permute.xlu0 %184
  %186 = vrot.lane.b32.xlu0 %v128, 2
  %v187 = vpop.permute.xlu0 %186
  %188 = vrot.lane.b32.xlu0 %v130, 2
  %v189 = vpop.permute.xlu0 %188
  %190 = vrot.lane.b32.xlu0 %v132, 2
  %v191 = vpop.permute.xlu0 %190
  %192 = vrot.lane.b32.xlu0 %v131, 2
  %v193 = vpop.permute.xlu0 %192
  %194 = vrot.lane.b32.xlu0 %v135, 2
  %v195 = vpop.permute.xlu0 %194
  %196 = vrot.lane.b32.xlu0 %v137, 2
  %v197 = vpop.permute.xlu0 %196
  %198 = vrot.lane.b32.xlu0 %v139, 2
  %v199 = vpop.permute.xlu0 %198
  %200 = vrot.lane.b32.xlu0 %v138, 2
  %v201 = vpop.permute.xlu0 %200
  %202 = vrot.lane.b32.xlu0 %v142, 2
  %v203 = vpop.permute.xlu0 %202
  %204 = vrot.lane.b32.xlu0 %v144, 2
  %v205 = vpop.permute.xlu0 %204
  %206 = vrot.lane.b32.xlu0 %v146, 2
  %v207 = vpop.permute.xlu0 %206
  %208 = vrot.lane.b32.xlu0 %v145, 2
  %v209 = vpop.permute.xlu0 %208
  %210 = vrot.lane.b32.xlu0 %v149, 2
  %v211 = vpop.permute.xlu0 %210
  %212 = vrot.lane.b32.xlu0 %v151, 2
  %v213 = vpop.permute.xlu0 %212
  %214 = vrot.lane.b32.xlu0 %v153, 2
  %v215 = vpop.permute.xlu0 %214
  %216 = vrot.lane.b32.xlu0 %v152, 2
  %v217 = vpop.permute.xlu0 %216
  %vm250 = vcmask 1045504
  %v251 = vrot.slane %v33, 2
  %v252 = vrot.slane %v34, 2
  %v253 = vsel %vm250, %v251, %v252
  %v254 = vrot.slane %v35, 2
  %v255 = vsel %vm250, %v252, %v254
  %v256 = vrot.slane %v36, 2
  %v257 = vsel %vm250, %v254, %v256
  %v258 = vrot.slane %v37, 2
  %v259 = vrot.slane %v38, 2
  %v260 = vsel %vm250, %v258, %v259
  %v261 = vrot.slane %v39, 2
  %v262 = vsel %vm250, %v259, %v261
  %v263 = vrot.slane %v40, 2
  %v264 = vsel %vm250, %v261, %v263
  %v265 = vrot.slane %v41, 2
  %v266 = vrot.slane %v42, 2
  %v267 = vsel %vm250, %v265, %v266
  %v268 = vrot.slane %v43, 2
  %v269 = vsel %vm250, %v266, %v268
  %v270 = vrot.slane %v44, 2
  %v271 = vsel %vm250, %v268, %v270
  %v272 = vrot.slane %v45, 2
  %v273 = vrot.slane %v46, 2
  %v274 = vsel %vm250, %v272, %v273
  %v275 = vrot.slane %v47, 2
  %v276 = vsel %vm250, %v273, %v275
  %v277 = vrot.slane %v48, 2
  %v278 = vsel %vm250, %v275, %v277
  %v279 = vrot.slane %v49, 2
  %v280 = vrot.slane %v50, 2
  %v281 = vsel %vm250, %v279, %v280
  %v282 = vrot.slane %v51, 2
  %v283 = vsel %vm250, %v280, %v282
  %v284 = vrot.slane %v52, 2
  %v285 = vsel %vm250, %v282, %v284
  %v286 = vrot.slane %v53, 2
  %v287 = vrot.slane %v54, 2
  %v288 = vsel %vm250, %v286, %v287
  %v289 = vrot.slane %v55, 2
  %v290 = vsel %vm250, %v287, %v289
  %v291 = vrot.slane %v56, 2
  %v292 = vsel %vm250, %v289, %v291
  %v293 = vrot.slane %v57, 2
  %v294 = vrot.slane %v58, 2
  %v295 = vsel %vm250, %v293, %v294
  %v296 = vrot.slane %v59, 2
  %v297 = vsel %vm250, %v294, %v296
  %v298 = vrot.slane %v60, 2
  %v299 = vsel %vm250, %v296, %v298
  %v300 = vrot.slane %v61, 2
  %v301 = vrot.slane %v62, 2
  %v302 = vsel %vm250, %v300, %v301
  %v303 = vrot.slane %v63, 2
  %v304 = vsel %vm250, %v301, %v303
  %v305 = vrot.slane %v64, 2
  %v306 = vsel %vm250, %v303, %v305
  %307 = vrot.lane.b32.xlu0 %v253, 4
  %v308 = vpop.permute.xlu0 %307
  %309 = vrot.lane.b32.xlu0 %v255, 4
  %v310 = vpop.permute.xlu0 %309
  %311 = vrot.lane.b32.xlu0 %v257, 4
  %v312 = vpop.permute.xlu0 %311
  %313 = vrot.lane.b32.xlu0 %v256, 4
  %v314 = vpop.permute.xlu0 %313
  %315 = vrot.lane.b32.xlu0 %v260, 4
  %v316 = vpop.permute.xlu0 %315
  %317 = vrot.lane.b32.xlu0 %v262, 4
  %v318 = vpop.permute.xlu0 %317
  %319 = vrot.lane.b32.xlu0 %v264, 4
  %v320 = vpop.permute.xlu0 %319
  %321 = vrot.lane.b32.xlu0 %v263, 4
  %v322 = vpop.permute.xlu0 %321
  %323 = vrot.lane.b32.xlu0 %v267, 4
  %v324 = vpop.permute.xlu0 %323
  %325 = vrot.lane.b32.xlu0 %v269, 4
  %v326 = vpop.permute.xlu0 %325
  %327 = vrot.lane.b32.xlu0 %v271, 4
  %v328 = vpop.permute.xlu0 %327
  %329 = vrot.lane.b32.xlu0 %v270, 4
  %v330 = vpop.permute.xlu0 %329
  %331 = vrot.lane.b32.xlu0 %v274, 4
  %v332 = vpop.permute.xlu0 %331
  %333 = vrot.lane.b32.xlu0 %v276, 4
  %v334 = vpop.permute.xlu0 %333
  %335 = vrot.lane.b32.xlu0 %v278, 4
  %v336 = vpop.permute.xlu0 %335
  %337 = vrot.lane.b32.xlu0 %v277, 4
  %v338 = vpop.permute.xlu0 %337
  %339 = vrot.lane.b32.xlu0 %v281, 4
  %v340 = vpop.permute.xlu0 %339
  %341 = vrot.lane.b32.xlu0 %v283, 4
  %v342 = vpop.permute.xlu0 %341
  %343 = vrot.lane.b32.xlu0 %v285, 4
  %v344 = vpop.permute.xlu0 %343
  %345 = vrot.lane.b32.xlu0 %v284, 4
  %v346 = vpop.permute.xlu0 %345
  %347 = vrot.lane.b32.xlu0 %v288, 4
  %v348 = vpop.permute.xlu0 %347
  %349 = vrot.lane.b32.xlu0 %v290, 4
  %v350 = vpop.permute.xlu0 %349
  %351 = vrot.lane.b32.xlu0 %v292, 4
  %v352 = vpop.permute.xlu0 %351
  %353 = vrot.lane.b32.xlu0 %v291, 4
  %v354 = vpop.permute.xlu0 %353
  %355 = vrot.lane.b32.xlu0 %v295, 4
  %v356 = vpop.permute.xlu0 %355
  %357 = vrot.lane.b32.xlu0 %v297, 4
  %v358 = vpop.permute.xlu0 %357
  %359 = vrot.lane.b32.xlu0 %v299, 4
  %v360 = vpop.permute.xlu0 %359
  %361 = vrot.lane.b32.xlu0 %v298, 4
  %v362 = vpop.permute.xlu0 %361
  %363 = vrot.lane.b32.xlu0 %v302, 4
  %v364 = vpop.permute.xlu0 %363
  %365 = vrot.lane.b32.xlu0 %v304, 4
  %v366 = vpop.permute.xlu0 %365
  %367 = vrot.lane.b32.xlu0 %v306, 4
  %v368 = vpop.permute.xlu0 %367
  %369 = vrot.lane.b32.xlu0 %v305, 4
  %v370 = vpop.permute.xlu0 %369
  %vm403 = vcmask 1044480
  %v404 = vrot.slane %v33, 3
  %v405 = vrot.slane %v34, 3
  %v406 = vsel %vm403, %v404, %v405
  %v407 = vrot.slane %v35, 3
  %v408 = vsel %vm403, %v405, %v407
  %v409 = vrot.slane %v36, 3
  %v410 = vsel %vm403, %v407, %v409
  %v411 = vrot.slane %v37, 3
  %v412 = vrot.slane %v38, 3
  %v413 = vsel %vm403, %v411, %v412
  %v414 = vrot.slane %v39, 3
  %v415 = vsel %vm403, %v412, %v414
  %v416 = vrot.slane %v40, 3
  %v417 = vsel %vm403, %v414, %v416
  %v418 = vrot.slane %v41, 3
  %v419 = vrot.slane %v42, 3
  %v420 = vsel %vm403, %v418, %v419
  %v421 = vrot.slane %v43, 3
  %v422 = vsel %vm403, %v419, %v421
  %v423 = vrot.slane %v44, 3
  %v424 = vsel %vm403, %v421, %v423
  %v425 = vrot.slane %v45, 3
  %v426 = vrot.slane %v46, 3
  %v427 = vsel %vm403, %v425, %v426
  %v428 = vrot.slane %v47, 3
  %v429 = vsel %vm403, %v426, %v428
  %v430 = vrot.slane %v48, 3
  %v431 = vsel %vm403, %v428, %v430
  %v432 = vrot.slane %v49, 3
  %v433 = vrot.slane %v50, 3
  %v434 = vsel %vm403, %v432, %v433
  %v435 = vrot.slane %v51, 3
  %v436 = vsel %vm403, %v433, %v435
  %v437 = vrot.slane %v52, 3
  %v438 = vsel %vm403, %v435, %v437
  %v439 = vrot.slane %v53, 3
  %v440 = vrot.slane %v54, 3
  %v441 = vsel %vm403, %v439, %v440
  %v442 = vrot.slane %v55, 3
  %v443 = vsel %vm403, %v440, %v442
  %v444 = vrot.slane %v56, 3
  %v445 = vsel %vm403, %v442, %v444
  %v446 = vrot.slane %v57, 3
  %v447 = vrot.slane %v58, 3
  %v448 = vsel %vm403, %v446, %v447
  %v449 = vrot.slane %v59, 3
  %v450 = vsel %vm403, %v447, %v449
  %v451 = vrot.slane %v60, 3
  %v452 = vsel %vm403, %v449, %v451
  %v453 = vrot.slane %v61, 3
  %v454 = vrot.slane %v62, 3
  %v455 = vsel %vm403, %v453, %v454
  %v456 = vrot.slane %v63, 3
  %v457 = vsel %vm403, %v454, %v456
  %v458 = vrot.slane %v64, 3
  %v459 = vsel %vm403, %v456, %v458
  %460 = vrot.lane.b32.xlu0 %v406, 6
  %v461 = vpop.permute.xlu0 %460
  %462 = vrot.lane.b32.xlu0 %v408, 6
  %v463 = vpop.permute.xlu0 %462
  %464 = vrot.lane.b32.xlu0 %v410, 6
  %v465 = vpop.permute.xlu0 %464
  %466 = vrot.lane.b32.xlu0 %v409, 6
  %v467 = vpop.permute.xlu0 %466
  %468 = vrot.lane.b32.xlu0 %v413, 6
  %v469 = vpop.permute.xlu0 %468
  %470 = vrot.lane.b32.xlu0 %v415, 6
  %v471 = vpop.permute.xlu0 %470
  %472 = vrot.lane.b32.xlu0 %v417, 6
  %v473 = vpop.permute.xlu0 %472
  %474 = vrot.lane.b32.xlu0 %v416, 6
  %v475 = vpop.permute.xlu0 %474
  %476 = vrot.lane.b32.xlu0 %v420, 6
  %v477 = vpop.permute.xlu0 %476
  %478 = vrot.lane.b32.xlu0 %v422, 6
  %v479 = vpop.permute.xlu0 %478
  %480 = vrot.lane.b32.xlu0 %v424, 6
  %v481 = vpop.permute.xlu0 %480
  %482 = vrot.lane.b32.xlu0 %v423, 6
  %v483 = vpop.permute.xlu0 %482
  %484 = vrot.lane.b32.xlu0 %v427, 6
  %v485 = vpop.permute.xlu0 %484
  %486 = vrot.lane.b32.xlu0 %v429, 6
  %v487 = vpop.permute.xlu0 %486
  %488 = vrot.lane.b32.xlu0 %v431, 6
  %v489 = vpop.permute.xlu0 %488
  %490 = vrot.lane.b32.xlu0 %v430, 6
  %v491 = vpop.permute.xlu0 %490
  %492 = vrot.lane.b32.xlu0 %v434, 6
  %v493 = vpop.permute.xlu0 %492
  %494 = vrot.lane.b32.xlu0 %v436, 6
  %v495 = vpop.permute.xlu0 %494
  %496 = vrot.lane.b32.xlu0 %v438, 6
  %v497 = vpop.permute.xlu0 %496
  %498 = vrot.lane.b32.xlu0 %v437, 6
  %v499 = vpop.permute.xlu0 %498
  %500 = vrot.lane.b32.xlu0 %v441, 6
  %v501 = vpop.permute.xlu0 %500
  %502 = vrot.lane.b32.xlu0 %v443, 6
  %v503 = vpop.permute.xlu0 %502
  %504 = vrot.lane.b32.xlu0 %v445, 6
  %v505 = vpop.permute.xlu0 %504
  %506 = vrot.lane.b32.xlu0 %v444, 6
  %v507 = vpop.permute.xlu0 %506
  %508 = vrot.lane.b32.xlu0 %v448, 6
  %v509 = vpop.permute.xlu0 %508
  %510 = vrot.lane.b32.xlu0 %v450, 6
  %v511 = vpop.permute.xlu0 %510
  %512 = vrot.lane.b32.xlu0 %v452, 6
  %v513 = vpop.permute.xlu0 %512
  %514 = vrot.lane.b32.xlu0 %v451, 6
  %v515 = vpop.permute.xlu0 %514
  %516 = vrot.lane.b32.xlu0 %v455, 6
  %v517 = vpop.permute.xlu0 %516
  %518 = vrot.lane.b32.xlu0 %v457, 6
  %v519 = vpop.permute.xlu0 %518
  %520 = vrot.lane.b32.xlu0 %v459, 6
  %v521 = vpop.permute.xlu0 %520
  %522 = vrot.lane.b32.xlu0 %v458, 6
  %v523 = vpop.permute.xlu0 %522
  %vm556 = vcmask 1043456
  %v557 = vrot.slane %v33, 4
  %v558 = vrot.slane %v34, 4
  %v559 = vsel %vm556, %v557, %v558
  %v560 = vrot.slane %v35, 4
  %v561 = vsel %vm556, %v558, %v560
  %v562 = vrot.slane %v36, 4
  %v563 = vsel %vm556, %v560, %v562
  %v564 = vrot.slane %v37, 4
  %v565 = vrot.slane %v38, 4
  %v566 = vsel %vm556, %v564, %v565
  %v567 = vrot.slane %v39, 4
  %v568 = vsel %vm556, %v565, %v567
  %v569 = vrot.slane %v40, 4
  %v570 = vsel %vm556, %v567, %v569
  %v571 = vrot.slane %v41, 4
  %v572 = vrot.slane %v42, 4
  %v573 = vsel %vm556, %v571, %v572
  %v574 = vrot.slane %v43, 4
  %v575 = vsel %vm556, %v572, %v574
  %v576 = vrot.slane %v44, 4
  %v577 = vsel %vm556, %v574, %v576
  %v578 = vrot.slane %v45, 4
  %v579 = vrot.slane %v46, 4
  %v580 = vsel %vm556, %v578, %v579
  %v581 = vrot.slane %v47, 4
  %v582 = vsel %vm556, %v579, %v581
  %v583 = vrot.slane %v48, 4
  %v584 = vsel %vm556, %v581, %v583
  %v585 = vrot.slane %v49, 4
  %v586 = vrot.slane %v50, 4
  %v587 = vsel %vm556, %v585, %v586
  %v588 = vrot.slane %v51, 4
  %v589 = vsel %vm556, %v586, %v588
  %v590 = vrot.slane %v52, 4
  %v591 = vsel %vm556, %v588, %v590
  %v592 = vrot.slane %v53, 4
  %v593 = vrot.slane %v54, 4
  %v594 = vsel %vm556, %v592, %v593
  %v595 = vrot.slane %v55, 4
  %v596 = vsel %vm556, %v593, %v595
  %v597 = vrot.slane %v56, 4
  %v598 = vsel %vm556, %v595, %v597
  %v599 = vrot.slane %v57, 4
  %v600 = vrot.slane %v58, 4
  %v601 = vsel %vm556, %v599, %v600
  %v602 = vrot.slane %v59, 4
  %v603 = vsel %vm556, %v600, %v602
  %v604 = vrot.slane %v60, 4
  %v605 = vsel %vm556, %v602, %v604
  %v606 = vrot.slane %v61, 4
  %v607 = vrot.slane %v62, 4
  %v608 = vsel %vm556, %v606, %v607
  %v609 = vrot.slane %v63, 4
  %v610 = vsel %vm556, %v607, %v609
  %v611 = vrot.slane %v64, 4
  %v612 = vsel %vm556, %v609, %v611
  %613 = vrot.lane.b32.xlu0 %v559, 8
  %v614 = vpop.permute.xlu0 %613
  %615 = vrot.lane.b32.xlu0 %v561, 8
  %v616 = vpop.permute.xlu0 %615
  %617 = vrot.lane.b32.xlu0 %v563, 8
  %v618 = vpop.permute.xlu0 %617
  %619 = vrot.lane.b32.xlu0 %v562, 8
  %v620 = vpop.permute.xlu0 %619
  %621 = vrot.lane.b32.xlu0 %v566, 8
  %v622 = vpop.permute.xlu0 %621
  %623 = vrot.lane.b32.xlu0 %v568, 8
  %v624 = vpop.permute.xlu0 %623
  %625 = vrot.lane.b32.xlu0 %v570, 8
  %v626 = vpop.permute.xlu0 %625
  %627 = vrot.lane.b32.xlu0 %v569, 8
  %v628 = vpop.permute.xlu0 %627
  %629 = vrot.lane.b32.xlu0 %v573, 8
  %v630 = vpop.permute.xlu0 %629
  %631 = vrot.lane.b32.xlu0 %v575, 8
  %v632 = vpop.permute.xlu0 %631
  %633 = vrot.lane.b32.xlu0 %v577, 8
  %v634 = vpop.permute.xlu0 %633
  %635 = vrot.lane.b32.xlu0 %v576, 8
  %v636 = vpop.permute.xlu0 %635
  %637 = vrot.lane.b32.xlu0 %v580, 8
  %v638 = vpop.permute.xlu0 %637
  %639 = vrot.lane.b32.xlu0 %v582, 8
  %v640 = vpop.permute.xlu0 %639
  %641 = vrot.lane.b32.xlu0 %v584, 8
  %v642 = vpop.permute.xlu0 %641
  %643 = vrot.lane.b32.xlu0 %v583, 8
  %v644 = vpop.permute.xlu0 %643
  %645 = vrot.lane.b32.xlu0 %v587, 8
  %v646 = vpop.permute.xlu0 %645
  %647 = vrot.lane.b32.xlu0 %v589, 8
  %v648 = vpop.permute.xlu0 %647
  %649 = vrot.lane.b32.xlu0 %v591, 8
  %v650 = vpop.permute.xlu0 %649
  %651 = vrot.lane.b32.xlu0 %v590, 8
  %v652 = vpop.permute.xlu0 %651
  %653 = vrot.lane.b32.xlu0 %v594, 8
  %v654 = vpop.permute.xlu0 %653
  %655 = vrot.lane.b32.xlu0 %v596, 8
  %v656 = vpop.permute.xlu0 %655
  %657 = vrot.lane.b32.xlu0 %v598, 8
  %v658 = vpop.permute.xlu0 %657
  %659 = vrot.lane.b32.xlu0 %v597, 8
  %v660 = vpop.permute.xlu0 %659
  %661 = vrot.lane.b32.xlu0 %v601, 8
  %v662 = vpop.permute.xlu0 %661
  %663 = vrot.lane.b32.xlu0 %v603, 8
  %v664 = vpop.permute.xlu0 %663
  %665 = vrot.lane.b32.xlu0 %v605, 8
  %v666 = vpop.permute.xlu0 %665
  %667 = vrot.lane.b32.xlu0 %v604, 8
  %v668 = vpop.permute.xlu0 %667
  %669 = vrot.lane.b32.xlu0 %v608, 8
  %v670 = vpop.permute.xlu0 %669
  %671 = vrot.lane.b32.xlu0 %v610, 8
  %v672 = vpop.permute.xlu0 %671
  %673 = vrot.lane.b32.xlu0 %v612, 8
  %v674 = vpop.permute.xlu0 %673
  %675 = vrot.lane.b32.xlu0 %v611, 8
  %v676 = vpop.permute.xlu0 %675
  %vm709 = vcmask 15360
  %v710 = vsel %vm709, %v33, %v155
  %v711 = vsel %vm709, %v34, %v157
  %v712 = vsel %vm709, %v35, %v159
  %v713 = vsel %vm709, %v36, %v161
  %v714 = vsel %vm709, %v37, %v163
  %v715 = vsel %vm709, %v38, %v165
  %v716 = vsel %vm709, %v39, %v167
  %v717 = vsel %vm709, %v40, %v169
  %v718 = vsel %vm709, %v41, %v171
  %v719 = vsel %vm709, %v42, %v173
  %v720 = vsel %vm709, %v43, %v175
  %v721 = vsel %vm709, %v44, %v177
  %v722 = vsel %vm709, %v45, %v179
  %v723 = vsel %vm709, %v46, %v181
  %v724 = vsel %vm709, %v47, %v183
  %v725 = vsel %vm709, %v48, %v185
  %v726 = vsel %vm709, %v49, %v187
  %v727 = vsel %vm709, %v50, %v189
  %v728 = vsel %vm709, %v51, %v191
  %v729 = vsel %vm709, %v52, %v193
  %v730 = vsel %vm709, %v53, %v195
  %v731 = vsel %vm709, %v54, %v197
  %v732 = vsel %vm709, %v55, %v199
  %v733 = vsel %vm709, %v56, %v201
  %v734 = vsel %vm709, %v57, %v203
  %v735 = vsel %vm709, %v58, %v205
  %v736 = vsel %vm709, %v59, %v207
  %v737 = vsel %vm709, %v60, %v209
  %v738 = vsel %vm709, %v61, %v211
  %v739 = vsel %vm709, %v62, %v213
  %v740 = vsel %vm709, %v63, %v215
  %v741 = vsel %vm709, %v64, %v217
  %vm742 = vcmask 31744
  %v743 = vsel %vm742, %v710, %v308
  %v744 = vsel %vm742, %v711, %v310
  %v745 = vsel %vm742, %v712, %v312
  %v746 = vsel %vm742, %v713, %v314
  %v747 = vsel %vm742, %v714, %v316
  %v748 = vsel %vm742, %v715, %v318
  %v749 = vsel %vm742, %v716, %v320
  %v750 = vsel %vm742, %v717, %v322
  %v751 = vsel %vm742, %v718, %v324
  %v752 = vsel %vm742, %v719, %v326
  %v753 = vsel %vm742, %v720, %v328
  %v754 = vsel %vm742, %v721, %v330
  %v755 = vsel %vm742, %v722, %v332
  %v756 = vsel %vm742, %v723, %v334
  %v757 = vsel %vm742, %v724, %v336
  %v758 = vsel %vm742, %v725, %v338
  %v759 = vsel %vm742, %v726, %v340
  %v760 = vsel %vm742, %v727, %v342
  %v761 = vsel %vm742, %v728, %v344
  %v762 = vsel %vm742, %v729, %v346
  %v763 = vsel %vm742, %v730, %v348
  %v764 = vsel %vm742, %v731, %v350
  %v765 = vsel %vm742, %v732, %v352
  %v766 = vsel %vm742, %v733, %v354
  %v767 = vsel %vm742, %v734, %v356
  %v768 = vsel %vm742, %v735, %v358
  %v769 = vsel %vm742, %v736, %v360
  %v770 = vsel %vm742, %v737, %v362
  %v771 = vsel %vm742, %v738, %v364
  %v772 = vsel %vm742, %v739, %v366
  %v773 = vsel %vm742, %v740, %v368
  %v774 = vsel %vm742, %v741, %v370
  %vm775 = vcmask 48128
  %v776 = vsel %vm775, %v743, %v461
  %v777 = vsel %vm775, %v744, %v463
  %v778 = vsel %vm775, %v745, %v465
  %v779 = vsel %vm775, %v746, %v467
  %v780 = vsel %vm775, %v747, %v469
  %v781 = vsel %vm775, %v748, %v471
  %v782 = vsel %vm775, %v749, %v473
  %v783 = vsel %vm775, %v750, %v475
  %v784 = vsel %vm775, %v751, %v477
  %v785 = vsel %vm775, %v752, %v479
  %v786 = vsel %vm775, %v753, %v481
  %v787 = vsel %vm775, %v754, %v483
  %v788 = vsel %vm775, %v755, %v485
  %v789 = vsel %vm775, %v756, %v487
  %v790 = vsel %vm775, %v757, %v489
  %v791 = vsel %vm775, %v758, %v491
  %v792 = vsel %vm775, %v759, %v493
  %v793 = vsel %vm775, %v760, %v495
  %v794 = vsel %vm775, %v761, %v497
  %v795 = vsel %vm775, %v762, %v499
  %v796 = vsel %vm775, %v763, %v501
  %v797 = vsel %vm775, %v764, %v503
  %v798 = vsel %vm775, %v765, %v505
  %v799 = vsel %vm775, %v766, %v507
  %v800 = vsel %vm775, %v767, %v509
  %v801 = vsel %vm775, %v768, %v511
  %v802 = vsel %vm775, %v769, %v513
  %v803 = vsel %vm775, %v770, %v515
  %v804 = vsel %vm775, %v771, %v517
  %v805 = vsel %vm775, %v772, %v519
  %v806 = vsel %vm775, %v773, %v521
  %v807 = vsel %vm775, %v774, %v523
  %vm808 = vcmask 64512
  %v809 = vsel %vm808, %v776, %v614
  %v810 = vsel %vm808, %v777, %v616
  %v811 = vsel %vm808, %v778, %v618
  %v812 = vsel %vm808, %v779, %v620
  %v813 = vsel %vm808, %v780, %v622
  %v814 = vsel %vm808, %v781, %v624
  %v815 = vsel %vm808, %v782, %v626
  %v816 = vsel %vm808, %v783, %v628
  %v817 = vsel %vm808, %v784, %v630
  %v818 = vsel %vm808, %v785, %v632
  %v819 = vsel %vm808, %v786, %v634
  %v820 = vsel %vm808, %v787, %v636
  %v821 = vsel %vm808, %v788, %v638
  %v822 = vsel %vm808, %v789, %v640
  %v823 = vsel %vm808, %v790, %v642
  %v824 = vsel %vm808, %v791, %v644
  %v825 = vsel %vm808, %v792, %v646
  %v826 = vsel %vm808, %v793, %v648
  %v827 = vsel %vm808, %v794, %v650
  %v828 = vsel %vm808, %v795, %v652
  %v829 = vsel %vm808, %v796, %v654
  %v830 = vsel %vm808, %v797, %v656
  %v831 = vsel %vm808, %v798, %v658
  %v832 = vsel %vm808, %v799, %v660
  %v833 = vsel %vm808, %v800, %v662
  %v834 = vsel %vm808, %v801, %v664
  %v835 = vsel %vm808, %v802, %v666
  %v836 = vsel %vm808, %v803, %v668
  %v837 = vsel %vm808, %v804, %v670
  %v838 = vsel %vm808, %v805, %v672
  %v839 = vsel %vm808, %v806, %v674
  %v840 = vsel %vm808, %v807, %v676
  %v873 = vrot.slane %v809, 2
  %v874 = vrot.slane %v810, 2
  %v875 = vsel %vm250, %v873, %v874
  %v876 = vrot.slane %v811, 2
  %v877 = vsel %vm250, %v874, %v876
  %v878 = vrot.slane %v812, 2
  %v879 = vsel %vm250, %v876, %v878
  %v880 = vrot.slane %v813, 2
  %v881 = vrot.slane %v814, 2
  %v882 = vsel %vm250, %v880, %v881
  %v883 = vrot.slane %v815, 2
  %v884 = vsel %vm250, %v881, %v883
  %v885 = vrot.slane %v816, 2
  %v886 = vsel %vm250, %v883, %v885
  %v887 = vrot.slane %v817, 2
  %v888 = vrot.slane %v818, 2
  %v889 = vsel %vm250, %v887, %v888
  %v890 = vrot.slane %v819, 2
  %v891 = vsel %vm250, %v888, %v890
  %v892 = vrot.slane %v820, 2
  %v893 = vsel %vm250, %v890, %v892
  %v894 = vrot.slane %v821, 2
  %v895 = vrot.slane %v822, 2
  %v896 = vsel %vm250, %v894, %v895
  %v897 = vrot.slane %v823, 2
  %v898 = vsel %vm250, %v895, %v897
  %v899 = vrot.slane %v824, 2
  %v900 = vsel %vm250, %v897, %v899
  %v901 = vrot.slane %v825, 2
  %v902 = vrot.slane %v826, 2
  %v903 = vsel %vm250, %v901, %v902
  %v904 = vrot.slane %v827, 2
  %v905 = vsel %vm250, %v902, %v904
  %v906 = vrot.slane %v828, 2
  %v907 = vsel %vm250, %v904, %v906
  %v908 = vrot.slane %v829, 2
  %v909 = vrot.slane %v830, 2
  %v910 = vsel %vm250, %v908, %v909
  %v911 = vrot.slane %v831, 2
  %v912 = vsel %vm250, %v909, %v911
  %v913 = vrot.slane %v832, 2
  %v914 = vsel %vm250, %v911, %v913
  %v915 = vrot.slane %v833, 2
  %v916 = vrot.slane %v834, 2
  %v917 = vsel %vm250, %v915, %v916
  %v918 = vrot.slane %v835, 2
  %v919 = vsel %vm250, %v916, %v918
  %v920 = vrot.slane %v836, 2
  %v921 = vsel %vm250, %v918, %v920
  %v922 = vrot.slane %v837, 2
  %v923 = vrot.slane %v838, 2
  %v924 = vsel %vm250, %v922, %v923
  %v925 = vrot.slane %v839, 2
  %v926 = vsel %vm250, %v923, %v925
  %v927 = vrot.slane %v840, 2
  %v928 = vsel %vm250, %v925, %v927
  %v929 = vld [vmem:[%s1] sm:$0xff]
  %v930 = vld [vmem:[%s1 + $0x8] sm:$0x3]
  %v931 = vld [vmem:[%s2] sm:$0x1]
  %v933 = vperm.slane %v931, 0
  %vm935 = vcmask 80896
  %v936 = vsel %vm935, %v875, 0
  %v938 = vsel %vm935, %v877, 0
  %v940 = vsel %vm935, %v879, 0
  %v942 = vsel %vm935, %v882, 0
  %v944 = vsel %vm935, %v884, 0
  %v946 = vsel %vm935, %v886, 0
  %v948 = vsel %vm935, %v889, 0
  %v950 = vsel %vm935, %v891, 0
  %v952 = vsel %vm935, %v893, 0
  %v954 = vsel %vm935, %v896, 0
  %v956 = vsel %vm935, %v898, 0
  %v958 = vsel %vm935, %v900, 0
  %v960 = vsel %vm935, %v903, 0
  %v962 = vsel %vm935, %v905, 0
  %v964 = vsel %vm935, %v907, 0
  %v966 = vsel %vm935, %v910, 0
  %v968 = vsel %vm935, %v912, 0
  %v970 = vsel %vm935, %v914, 0
  %v972 = vsel %vm935, %v917, 0
  %v974 = vsel %vm935, %v919, 0
  %v976 = vsel %vm935, %v921, 0
  %v978 = vsel %vm935, %v924, 0
  %v980 = vsel %vm935, %v926, 0
  %v982 = vsel %vm935, %v928, 0
  %vm984 = vcmask 1041408
  %v986 = vsel %vm984, %v930, 0
  %988 = vmatpush.msra.mxu0 0.0
  %989 = vmatpush.msra.mxu0 0.0
  %990 = vmatpush.msra.mxu0 0.0
  %991 = vmatpush.msra.mxu0 0.0
  %992 = vmatpush.msra.mxu0 0.0
  %993 = vmatpush.msra.mxu0 0.0
  %994 = vmatpush.msra.mxu0 0.0
  %995 = vmatpush.msra.mxu0 0.0
  %996 = vmatpush.msra.mxu0 0.0
  %997 = vmatpush.msra.mxu0 0.0
  %998 = vmatpush.msra.mxu0 0.0
  %999 = vmatpush.msra.mxu0 0.0
  %1000 = vmatpush.msra.mxu0 0.0
  %1001 = vmatpush.msra.mxu0 0.0
  %1002 = vmatpush.msra.mxu0 %v986
  %1003 = vmatpush.msra.mxu0 %v929
  %1004 = vmatmul.f32.gmra.mxu0 %v936
  %v1005 = vpop.f32.mrf.mxu0
  %v1006 = vadd.f32 %v933, %v1005
  %1007 = vmatmul.f32.gmra.mxu0 %v938
  %v1008 = vpop.f32.mrf.mxu0
  %v1009 = vadd.f32 %v933, %v1008
  %1010 = vmatmul.f32.gmra.mxu0 %v940
  %v1011 = vpop.f32.mrf.mxu0
  %v1012 = vadd.f32 %v933, %v1011
  %1013 = vmatmul.f32.gmra.mxu0 %v942
  %v1014 = vpop.f32.mrf.mxu0
  %v1015 = vadd.f32 %v933, %v1014
  %1016 = vmatmul.f32.gmra.mxu0 %v944
  %v1017 = vpop.f32.mrf.mxu0
  %v1018 = vadd.f32 %v933, %v1017
  %1019 = vmatmul.f32.gmra.mxu0 %v946
  %v1020 = vpop.f32.mrf.mxu0
  %v1021 = vadd.f32 %v933, %v1020
  %1022 = vmatmul.f32.gmra.mxu0 %v948
  %v1023 = vpop.f32.mrf.mxu0
  %v1024 = vadd.f32 %v933, %v1023
  %1025 = vmatmul.f32.gmra.mxu0 %v950
  %v1026 = vpop.f32.mrf.mxu0
  %v1027 = vadd.f32 %v933, %v1026
  %1028 = vmatmul.f32.gmra.mxu0 %v952
  %v1029 = vpop.f32.mrf.mxu0
  %v1030 = vadd.f32 %v933, %v1029
  %1031 = vmatmul.f32.gmra.mxu0 %v954
  %v1032 = vpop.f32.mrf.mxu0
  %v1033 = vadd.f32 %v933, %v1032
  %1034 = vmatmul.f32.gmra.mxu0 %v956
  %v1035 = vpop.f32.mrf.mxu0
  %v1036 = vadd.f32 %v933, %v1035
  %1037 = vmatmul.f32.gmra.mxu0 %v958
  %v1038 = vpop.f32.mrf.mxu0
  %v1039 = vadd.f32 %v933, %v1038
  %1040 = vmatmul.f32.gmra.mxu0 %v960
  %v1041 = vpop.f32.mrf.mxu0
  %v1042 = vadd.f32 %v933, %v1041
  %1043 = vmatmul.f32.gmra.mxu0 %v962
  %v1044 = vpop.f32.mrf.mxu0
  %v1045 = vadd.f32 %v933, %v1044
  %1046 = vmatmul.f32.gmra.mxu0 %v964
  %v1047 = vpop.f32.mrf.mxu0
  %v1048 = vadd.f32 %v933, %v1047
  %1049 = vmatmul.f32.gmra.mxu0 %v966
  %v1050 = vpop.f32.mrf.mxu0
  %v1051 = vadd.f32 %v933, %v1050
  %1052 = vmatmul.f32.gmra.mxu0 %v968
  %v1053 = vpop.f32.mrf.mxu0
  %v1054 = vadd.f32 %v933, %v1053
  %1055 = vmatmul.f32.gmra.mxu0 %v970
  %v1056 = vpop.f32.mrf.mxu0
  %v1057 = vadd.f32 %v933, %v1056
  %1058 = vmatmul.f32.gmra.mxu0 %v972
  %v1059 = vpop.f32.mrf.mxu0
  %v1060 = vadd.f32 %v933, %v1059
  %1061 = vmatmul.f32.gmra.mxu0 %v974
  %v1062 = vpop.f32.mrf.mxu0
  %v1063 = vadd.f32 %v933, %v1062
  %1064 = vmatmul.f32.gmra.mxu0 %v976
  %v1065 = vpop.f32.mrf.mxu0
  %v1066 = vadd.f32 %v933, %v1065
  %1067 = vmatmul.f32.gmra.mxu0 %v978
  %v1068 = vpop.f32.mrf.mxu0
  %v1069 = vadd.f32 %v933, %v1068
  %1070 = vmatmul.f32.gmra.mxu0 %v980
  %v1071 = vpop.f32.mrf.mxu0
  %v1072 = vadd.f32 %v933, %v1071
  %1073 = vmatmul.f32.gmra.mxu0 %v982
  %v1074 = vpop.f32.mrf.mxu0
  %v1075 = vadd.f32 %v933, %v1074
  %1076 = vdwg.mxu0
  %v1077 = vmax.f32 %v1006, 0.0
  %v1078 = vmax.f32 %v1009, 0.0
  %v1079 = vmax.f32 %v1012, 0.0
  %v1080 = vmax.f32 %v1015, 0.0
  %v1081 = vmax.f32 %v1018, 0.0
  %v1082 = vmax.f32 %v1021, 0.0
  %v1083 = vmax.f32 %v1024, 0.0
  %v1084 = vmax.f32 %v1027, 0.0
  %v1085 = vmax.f32 %v1030, 0.0
  %v1086 = vmax.f32 %v1033, 0.0
  %v1087 = vmax.f32 %v1036, 0.0
  %v1088 = vmax.f32 %v1039, 0.0
  %v1089 = vmax.f32 %v1042, 0.0
  %v1090 = vmax.f32 %v1045, 0.0
  %v1091 = vmax.f32 %v1048, 0.0
  %v1092 = vmax.f32 %v1051, 0.0
  %v1093 = vmax.f32 %v1054, 0.0
  %v1094 = vmax.f32 %v1057, 0.0
  %v1095 = vmax.f32 %v1060, 0.0
  %v1096 = vmax.f32 %v1063, 0.0
  %v1097 = vmax.f32 %v1066, 0.0
  %v1098 = vmax.f32 %v1069, 0.0
  %v1099 = vmax.f32 %v1072, 0.0
  %v1100 = vmax.f32 %v1075, 0.0
  %v1101 = vlaneseq
  %v1102 = vshrl.u32 %v1101, 7
  %v1103 = vadd.s32 %v1102, 8
  %v1104 = vadd.s32 %v1102, 16
  %s1105 = smul.u32 0, 16
  %v1106 = vstv %s1105
  %v1107 = vadd.s32 %v1106, %v1102
  %v1108 = vadd.s32 %v1106, %v1103
  %v1109 = vadd.s32 %v1106, %v1104
  %v1110 = vsub.s32 %v1107, 4
  %v1111 = vsub.s32 %v1108, 4
  %v1112 = vsub.s32 %v1109, 4
  %vm1113 = vcmp.ge.s32.totalorder %v1110, 0
  %vm1114 = vcmp.ge.s32.totalorder %v1111, 0
  %vm1115 = vcmp.ge.s32.totalorder %v1112, 0
  %vm1116 = vcmp.lt.s32.totalorder %v1110, 16
  %vm1117 = vcmp.lt.s32.totalorder %v1111, 16
  %vm1118 = vcmp.lt.s32.totalorder %v1112, 16
  %vm1119 = vmand %vm1113, %vm1116
  %vm1120 = vmand %vm1114, %vm1117
  %vm1121 = vmand %vm1115, %vm1118
  %v1122 = vsel %vm1119, 1, 0
  %v1123 = vsel %vm1120, 1, 0
  %v1124 = vsel %vm1121, 1, 0
  %vm1125 = vcmp.eq.s32.totalorder %v1122, 1
  %vm1126 = vcmp.eq.s32.totalorder %v1123, 1
  %vm1127 = vcmp.eq.s32.totalorder %v1124, 1
  %v1128 = vsel %vm1125, %v1077, 0.0
  %v1129 = vsel %vm1126, %v1078, 0.0
  %v1130 = vsel %vm1127, %v1079, 0.0
  %v1131 = vsel %vm1125, %v1080, 0.0
  %v1132 = vsel %vm1126, %v1081, 0.0
  %v1133 = vsel %vm1127, %v1082, 0.0
  %v1134 = vsel %vm1125, %v1083, 0.0
  %v1135 = vsel %vm1126, %v1084, 0.0
  %v1136 = vsel %vm1127, %v1085, 0.0
  %v1137 = vsel %vm1125, %v1086, 0.0
  %v1138 = vsel %vm1126, %v1087, 0.0
  %v1139 = vsel %vm1127, %v1088, 0.0
  %v1140 = vsel %vm1125, %v1089, 0.0
  %v1141 = vsel %vm1126, %v1090, 0.0
  %v1142 = vsel %vm1127, %v1091, 0.0
  %v1143 = vsel %vm1125, %v1092, 0.0
  %v1144 = vsel %vm1126, %v1093, 0.0
  %v1145 = vsel %vm1127, %v1094, 0.0
  %v1146 = vsel %vm1125, %v1095, 0.0
  %v1147 = vsel %vm1126, %v1096, 0.0
  %v1148 = vsel %vm1127, %v1097, 0.0
  %v1149 = vsel %vm1125, %v1098, 0.0
  %v1150 = vsel %vm1126, %v1099, 0.0
  %v1151 = vsel %vm1127, %v1100, 0.0
  %v1152 = vpack.c.bf16 %v1128, %v1128
  %v1153 = vpack.c.bf16 %v1129, %v1129
  %v1154 = vpack.c.bf16 %v1130, %v1130
  %v1155 = vpack.c.bf16 %v1131, %v1131
  %v1156 = vpack.c.bf16 %v1132, %v1132
  %v1157 = vpack.c.bf16 %v1133, %v1133
  %v1158 = vpack.c.bf16 %v1134, %v1134
  %v1159 = vpack.c.bf16 %v1135, %v1135
  %v1160 = vpack.c.bf16 %v1136, %v1136
  %v1161 = vpack.c.bf16 %v1137, %v1137
  %v1162 = vpack.c.bf16 %v1138, %v1138
  %v1163 = vpack.c.bf16 %v1139, %v1139
  %v1164 = vpack.c.bf16 %v1140, %v1140
  %v1165 = vpack.c.bf16 %v1141, %v1141
  %v1166 = vpack.c.bf16 %v1142, %v1142
  %v1167 = vpack.c.bf16 %v1143, %v1143
  %v1168 = vpack.c.bf16 %v1144, %v1144
  %v1169 = vpack.c.bf16 %v1145, %v1145
  %v1170 = vpack.c.bf16 %v1146, %v1146
  %v1171 = vpack.c.bf16 %v1147, %v1147
  %v1172 = vpack.c.bf16 %v1148, %v1148
  %v1173 = vpack.c.bf16 %v1149, %v1149
  %v1174 = vpack.c.bf16 %v1150, %v1150
  %v1175 = vpack.c.bf16 %v1151, %v1151
  %v1200 = vrot.slane %v1128, 4
  %v1201 = vrot.slane %v1129, 4
  %v1202 = vsel %vm556, %v1200, %v1201
  %v1203 = vrot.slane %v1130, 4
  %v1204 = vsel %vm556, %v1201, %v1203
  %v1205 = vrot.slane %v1131, 4
  %v1206 = vrot.slane %v1132, 4
  %v1207 = vsel %vm556, %v1205, %v1206
  %v1208 = vrot.slane %v1133, 4
  %v1209 = vsel %vm556, %v1206, %v1208
  %v1210 = vrot.slane %v1134, 4
  %v1211 = vrot.slane %v1135, 4
  %v1212 = vsel %vm556, %v1210, %v1211
  %v1213 = vrot.slane %v1136, 4
  %v1214 = vsel %vm556, %v1211, %v1213
  %v1215 = vrot.slane %v1137, 4
  %v1216 = vrot.slane %v1138, 4
  %v1217 = vsel %vm556, %v1215, %v1216
  %v1218 = vrot.slane %v1139, 4
  %v1219 = vsel %vm556, %v1216, %v1218
  %v1220 = vrot.slane %v1140, 4
  %v1221 = vrot.slane %v1141, 4
  %v1222 = vsel %vm556, %v1220, %v1221
  %v1223 = vrot.slane %v1142, 4
  %v1224 = vsel %vm556, %v1221, %v1223
  %v1225 = vrot.slane %v1143, 4
  %v1226 = vrot.slane %v1144, 4
  %v1227 = vsel %vm556, %v1225, %v1226
  %v1228 = vrot.slane %v1145, 4
  %v1229 = vsel %vm556, %v1226, %v1228
  %v1230 = vrot.slane %v1146, 4
  %v1231 = vrot.slane %v1147, 4
  %v1232 = vsel %vm556, %v1230, %v1231
  %v1233 = vrot.slane %v1148, 4
  %v1234 = vsel %vm556, %v1231, %v1233
  %v1235 = vrot.slane %v1149, 4
  %v1236 = vrot.slane %v1150, 4
  %v1237 = vsel %vm556, %v1235, %v1236
  %v1238 = vrot.slane %v1151, 4
  %v1239 = vsel %vm556, %v1236, %v1238
  %v1256 = vld [vmem:[%s4] sm:$0x1]
  %v1258 = vperm.slane %v1256, 0
  %v1260 = vadd.f32 %v1202, %v1258
  %v1261 = vadd.f32 %v1204, %v1258
  %v1262 = vadd.f32 %v1207, %v1258
  %v1263 = vadd.f32 %v1209, %v1258
  %v1264 = vadd.f32 %v1212, %v1258
  %v1265 = vadd.f32 %v1214, %v1258
  %v1266 = vadd.f32 %v1217, %v1258
  %v1267 = vadd.f32 %v1219, %v1258
  %v1268 = vadd.f32 %v1222, %v1258
  %v1269 = vadd.f32 %v1224, %v1258
  %v1270 = vadd.f32 %v1227, %v1258
  %v1271 = vadd.f32 %v1229, %v1258
  %v1272 = vadd.f32 %v1232, %v1258
  %v1273 = vadd.f32 %v1234, %v1258
  %v1274 = vadd.f32 %v1237, %v1258
  %v1275 = vadd.f32 %v1239, %v1258
  %vm1300 = vcmask 1042432
  %vm1301 = vcmask 1046532
  %vm1302 = vmor %vm1300, %vm1301
  %v1303 = vrot.slane %v1152, 5
  %v1304 = vrot.slane %v1303, 4
  %v1305 = vrot.slane %v1153, 5
  %v1306 = vsel %vm1302, %v1304, %v1305
  %v1307 = vrot.slane %v1305, 4
  %v1308 = vrot.slane %v1154, 5
  %v1309 = vsel %vm1302, %v1307, %v1308
  %v1310 = vrot.slane %v1155, 5
  %v1311 = vrot.slane %v1310, 4
  %v1312 = vrot.slane %v1156, 5
  %v1313 = vsel %vm1302, %v1311, %v1312
  %v1314 = vrot.slane %v1312, 4
  %v1315 = vrot.slane %v1157, 5
  %v1316 = vsel %vm1302, %v1314, %v1315
  %v1317 = vrot.slane %v1158, 5
  %v1318 = vrot.slane %v1317, 4
  %v1319 = vrot.slane %v1159, 5
  %v1320 = vsel %vm1302, %v1318, %v1319
  %v1321 = vrot.slane %v1319, 4
  %v1322 = vrot.slane %v1160, 5
  %v1323 = vsel %vm1302, %v1321, %v1322
  %v1324 = vrot.slane %v1161, 5
  %v1325 = vrot.slane %v1324, 4
  %v1326 = vrot.slane %v1162, 5
  %v1327 = vsel %vm1302, %v1325, %v1326
  %v1328 = vrot.slane %v1326, 4
  %v1329 = vrot.slane %v1163, 5
  %v1330 = vsel %vm1302, %v1328, %v1329
  %v1331 = vrot.slane %v1164, 5
  %v1332 = vrot.slane %v1331, 4
  %v1333 = vrot.slane %v1165, 5
  %v1334 = vsel %vm1302, %v1332, %v1333
  %v1335 = vrot.slane %v1333, 4
  %v1336 = vrot.slane %v1166, 5
  %v1337 = vsel %vm1302, %v1335, %v1336
  %v1338 = vrot.slane %v1167, 5
  %v1339 = vrot.slane %v1338, 4
  %v1340 = vrot.slane %v1168, 5
  %v1341 = vsel %vm1302, %v1339, %v1340
  %v1342 = vrot.slane %v1340, 4
  %v1343 = vrot.slane %v1169, 5
  %v1344 = vsel %vm1302, %v1342, %v1343
  %v1345 = vrot.slane %v1170, 5
  %v1346 = vrot.slane %v1345, 4
  %v1347 = vrot.slane %v1171, 5
  %v1348 = vsel %vm1302, %v1346, %v1347
  %v1349 = vrot.slane %v1347, 4
  %v1350 = vrot.slane %v1172, 5
  %v1351 = vsel %vm1302, %v1349, %v1350
  %v1352 = vrot.slane %v1173, 5
  %v1353 = vrot.slane %v1352, 4
  %v1354 = vrot.slane %v1174, 5
  %v1355 = vsel %vm1302, %v1353, %v1354
  %v1356 = vrot.slane %v1354, 4
  %v1357 = vrot.slane %v1175, 5
  %v1358 = vsel %vm1302, %v1356, %v1357
  %v1359 = vld [vmem:[%s3] sm:$0xf]
  %v1360 = vld [vmem:[%s3 + $0x4] sm:$0xf]
  %v1361 = vld [vmem:[%s3 + $0x8] sm:$0xf]
  %v1362 = vld [vmem:[%s3 + $0xc] sm:$0xf]
  %v1363 = vunpack.c.l.b16 %v1306
  %v1364 = vunpack.c.l.b16 %v1309
  %v1365 = vunpack.c.l.b16 %v1313
  %v1366 = vunpack.c.l.b16 %v1316
  %v1367 = vunpack.c.l.b16 %v1320
  %v1368 = vunpack.c.l.b16 %v1323
  %v1369 = vunpack.c.l.b16 %v1327
  %v1370 = vunpack.c.l.b16 %v1330
  %v1371 = vunpack.c.l.b16 %v1334
  %v1372 = vunpack.c.l.b16 %v1337
  %v1373 = vunpack.c.l.b16 %v1341
  %v1374 = vunpack.c.l.b16 %v1344
  %v1375 = vunpack.c.l.b16 %v1348
  %v1376 = vunpack.c.l.b16 %v1351
  %v1377 = vunpack.c.l.b16 %v1355
  %v1378 = vunpack.c.l.b16 %v1358
  %v1379 = vpack.c.b16 %v1364, %v1363
  %v1380 = vpack.c.b16 %v1366, %v1365
  %v1381 = vpack.c.b16 %v1368, %v1367
  %v1382 = vpack.c.b16 %v1370, %v1369
  %v1383 = vpack.c.b16 %v1372, %v1371
  %v1384 = vpack.c.b16 %v1374, %v1373
  %v1385 = vpack.c.b16 %v1376, %v1375
  %v1386 = vpack.c.b16 %v1378, %v1377
  %v1391 = vunpack.c.l.b16 %v1359
  %v1392 = vunpack.c.l.b16 %v1360
  %v1393 = vunpack.c.l.b16 %v1361
  %v1394 = vunpack.c.l.b16 %v1362
  %v1395 = vpack.c.b16 %v1392, %v1391
  %v1396 = vpack.c.b16 %v1394, %v1393
  %vm1399 = vcmask 261120
  %v1401 = vsel %vm1399, %v1379, 0
  %v1404 = vsel %vm1399, %v1380, 0
  %v1407 = vsel %vm1399, %v1381, 0
  %v1410 = vsel %vm1399, %v1382, 0
  %v1413 = vsel %vm1399, %v1383, 0
  %v1416 = vsel %vm1399, %v1384, 0
  %v1419 = vsel %vm1399, %v1385, 0
  %v1422 = vsel %vm1399, %v1386, 0
  %1424 = vmatpush.bf16.msra.mxu0 0
  %1425 = vmatpush.bf16.msra.mxu0 0
  %1426 = vmatpush.bf16.msra.mxu0 0
  %1427 = vmatpush.bf16.msra.mxu0 0
  %1428 = vmatpush.bf16.msra.mxu0 0
  %1429 = vmatpush.bf16.msra.mxu0 0
  %1430 = vmatpush.bf16.msra.mxu0 %v1396
  %1431 = vmatpush.bf16.msra.mxu0 %v1395
  %1432 = vmatmul.bf16.gmra.mxu0 %v1401
  %v1433 = vpop.f32.mrf.mxu0
  %v1434 = vadd.f32 0.0, %v1433
  %v1435 = vpop.f32.mrf.mxu0
  %v1436 = vadd.f32 0.0, %v1435
  %1437 = vmatmul.bf16.gmra.mxu0 %v1404
  %v1438 = vpop.f32.mrf.mxu0
  %v1439 = vadd.f32 0.0, %v1438
  %v1440 = vpop.f32.mrf.mxu0
  %v1441 = vadd.f32 0.0, %v1440
  %1442 = vmatmul.bf16.gmra.mxu0 %v1407
  %v1443 = vpop.f32.mrf.mxu0
  %v1444 = vadd.f32 0.0, %v1443
  %v1445 = vpop.f32.mrf.mxu0
  %v1446 = vadd.f32 0.0, %v1445
  %1447 = vmatmul.bf16.gmra.mxu0 %v1410
  %v1448 = vpop.f32.mrf.mxu0
  %v1449 = vadd.f32 0.0, %v1448
  %v1450 = vpop.f32.mrf.mxu0
  %v1451 = vadd.f32 0.0, %v1450
  %1452 = vmatmul.bf16.gmra.mxu0 %v1413
  %v1453 = vpop.f32.mrf.mxu0
  %v1454 = vadd.f32 0.0, %v1453
  %v1455 = vpop.f32.mrf.mxu0
  %v1456 = vadd.f32 0.0, %v1455
  %1457 = vmatmul.bf16.gmra.mxu0 %v1416
  %v1458 = vpop.f32.mrf.mxu0
  %v1459 = vadd.f32 0.0, %v1458
  %v1460 = vpop.f32.mrf.mxu0
  %v1461 = vadd.f32 0.0, %v1460
  %1462 = vmatmul.bf16.gmra.mxu0 %v1419
  %v1463 = vpop.f32.mrf.mxu0
  %v1464 = vadd.f32 0.0, %v1463
  %v1465 = vpop.f32.mrf.mxu0
  %v1466 = vadd.f32 0.0, %v1465
  %1467 = vmatmul.bf16.gmra.mxu0 %v1422
  %v1468 = vpop.f32.mrf.mxu0
  %v1469 = vadd.f32 0.0, %v1468
  %v1470 = vpop.f32.mrf.mxu0
  %v1471 = vadd.f32 0.0, %v1470
  %1472 = vdwg.mxu0
  %v1473 = vadd.f32 %v1260, %v1434
  %v1474 = vadd.f32 %v1261, %v1436
  %v1475 = vadd.f32 %v1262, %v1439
  %v1476 = vadd.f32 %v1263, %v1441
  %v1477 = vadd.f32 %v1264, %v1444
  %v1478 = vadd.f32 %v1265, %v1446
  %v1479 = vadd.f32 %v1266, %v1449
  %v1480 = vadd.f32 %v1267, %v1451
  %v1481 = vadd.f32 %v1268, %v1454
  %v1482 = vadd.f32 %v1269, %v1456
  %v1483 = vadd.f32 %v1270, %v1459
  %v1484 = vadd.f32 %v1271, %v1461
  %v1485 = vadd.f32 %v1272, %v1464
  %v1486 = vadd.f32 %v1273, %v1466
  %v1487 = vadd.f32 %v1274, %v1469
  %v1488 = vadd.f32 %v1275, %v1471
  %vm1489 = vsmask.f32 2304
  %vm1490 = vsmask.f32 6416
  %vm1491 = vmor %vm1489, %vm1490
  %v1493 = vshrl.u32 %v1152, 16
  %v1495 = vrot.slane %v1493, 5
  %v1496 = vshll.u32 %v1152, 16
  %v1498 = vrot.slane %v1496, 6
  %v1499 = vor.u32 %v1495, %v1498
  %v1500 = vrot.slane %v1499, 4
  %v1502 = vshrl.u32 %v1153, 16
  %v1504 = vrot.slane %v1502, 5
  %v1505 = vshll.u32 %v1153, 16
  %v1507 = vrot.slane %v1505, 6
  %v1508 = vor.u32 %v1504, %v1507
  %v1509 = vsel %vm1491, %v1500, %v1508
  %v1510 = vrot.slane %v1508, 4
  %v1512 = vshrl.u32 %v1154, 16
  %v1514 = vrot.slane %v1512, 5
  %v1515 = vshll.u32 %v1154, 16
  %v1517 = vrot.slane %v1515, 6
  %v1518 = vor.u32 %v1514, %v1517
  %v1519 = vsel %vm1491, %v1510, %v1518
  %v1521 = vshrl.u32 %v1155, 16
  %v1523 = vrot.slane %v1521, 5
  %v1524 = vshll.u32 %v1155, 16
  %v1526 = vrot.slane %v1524, 6
  %v1527 = vor.u32 %v1523, %v1526
  %v1528 = vrot.slane %v1527, 4
  %v1530 = vshrl.u32 %v1156, 16
  %v1532 = vrot.slane %v1530, 5
  %v1533 = vshll.u32 %v1156, 16
  %v1535 = vrot.slane %v1533, 6
  %v1536 = vor.u32 %v1532, %v1535
  %v1537 = vsel %vm1491, %v1528, %v1536
  %v1538 = vrot.slane %v1536, 4
  %v1540 = vshrl.u32 %v1157, 16
  %v1542 = vrot.slane %v1540, 5
  %v1543 = vshll.u32 %v1157, 16
  %v1545 = vrot.slane %v1543, 6
  %v1546 = vor.u32 %v1542, %v1545
  %v1547 = vsel %vm1491, %v1538, %v1546
  %v1549 = vshrl.u32 %v1158, 16
  %v1551 = vrot.slane %v1549, 5
  %v1552 = vshll.u32 %v1158, 16
  %v1554 = vrot.slane %v1552, 6
  %v1555 = vor.u32 %v1551, %v1554
  %v1556 = vrot.slane %v1555, 4
  %v1558 = vshrl.u32 %v1159, 16
  %v1560 = vrot.slane %v1558, 5
  %v1561 = vshll.u32 %v1159, 16
  %v1563 = vrot.slane %v1561, 6
  %v1564 = vor.u32 %v1560, %v1563
  %v1565 = vsel %vm1491, %v1556, %v1564
  %v1566 = vrot.slane %v1564, 4
  %v1568 = vshrl.u32 %v1160, 16
  %v1570 = vrot.slane %v1568, 5
  %v1571 = vshll.u32 %v1160, 16
  %v1573 = vrot.slane %v1571, 6
  %v1574 = vor.u32 %v1570, %v1573
  %v1575 = vsel %vm1491, %v1566, %v1574
  %v1577 = vshrl.u32 %v1161, 16
  %v1579 = vrot.slane %v1577, 5
  %v1580 = vshll.u32 %v1161, 16
  %v1582 = vrot.slane %v1580, 6
  %v1583 = vor.u32 %v1579, %v1582
  %v1584 = vrot.slane %v1583, 4
  %v1586 = vshrl.u32 %v1162, 16
  %v1588 = vrot.slane %v1586, 5
  %v1589 = vshll.u32 %v1162, 16
  %v1591 = vrot.slane %v1589, 6
  %v1592 = vor.u32 %v1588, %v1591
  %v1593 = vsel %vm1491, %v1584, %v1592
  %v1594 = vrot.slane %v1592, 4
  %v1596 = vshrl.u32 %v1163, 16
  %v1598 = vrot.slane %v1596, 5
  %v1599 = vshll.u32 %v1163, 16
  %v1601 = vrot.slane %v1599, 6
  %v1602 = vor.u32 %v1598, %v1601
  %v1603 = vsel %vm1491, %v1594, %v1602
  %v1605 = vshrl.u32 %v1164, 16
  %v1607 = vrot.slane %v1605, 5
  %v1608 = vshll.u32 %v1164, 16
  %v1610 = vrot.slane %v1608, 6
  %v1611 = vor.u32 %v1607, %v1610
  %v1612 = vrot.slane %v1611, 4
  %v1614 = vshrl.u32 %v1165, 16
  %v1616 = vrot.slane %v1614, 5
  %v1617 = vshll.u32 %v1165, 16
  %v1619 = vrot.slane %v1617, 6
  %v1620 = vor.u32 %v1616, %v1619
  %v1621 = vsel %vm1491, %v1612, %v1620
  %v1622 = vrot.slane %v1620, 4
  %v1624 = vshrl.u32 %v1166, 16
  %v1626 = vrot.slane %v1624, 5
  %v1627 = vshll.u32 %v1166, 16
  %v1629 = vrot.slane %v1627, 6
  %v1630 = vor.u32 %v1626, %v1629
  %v1631 = vsel %vm1491, %v1622, %v1630
  %v1633 = vshrl.u32 %v1167, 16
  %v1635 = vrot.slane %v1633, 5
  %v1636 = vshll.u32 %v1167, 16
  %v1638 = vrot.slane %v1636, 6
  %v1639 = vor.u32 %v1635, %v1638
  %v1640 = vrot.slane %v1639, 4
  %v1642 = vshrl.u32 %v1168, 16
  %v1644 = vrot.slane %v1642, 5
  %v1645 = vshll.u32 %v1168, 16
  %v1647 = vrot.slane %v1645, 6
  %v1648 = vor.u32 %v1644, %v1647
  %v1649 = vsel %vm1491, %v1640, %v1648
  %v1650 = vrot.slane %v1648, 4
  %v1652 = vshrl.u32 %v1169, 16
  %v1654 = vrot.slane %v1652, 5
  %v1655 = vshll.u32 %v1169, 16
  %v1657 = vrot.slane %v1655, 6
  %v1658 = vor.u32 %v1654, %v1657
  %v1659 = vsel %vm1491, %v1650, %v1658
  %v1661 = vshrl.u32 %v1170, 16
  %v1663 = vrot.slane %v1661, 5
  %v1664 = vshll.u32 %v1170, 16
  %v1666 = vrot.slane %v1664, 6
  %v1667 = vor.u32 %v1663, %v1666
  %v1668 = vrot.slane %v1667, 4
  %v1670 = vshrl.u32 %v1171, 16
  %v1672 = vrot.slane %v1670, 5
  %v1673 = vshll.u32 %v1171, 16
  %v1675 = vrot.slane %v1673, 6
  %v1676 = vor.u32 %v1672, %v1675
  %v1677 = vsel %vm1491, %v1668, %v1676
  %v1678 = vrot.slane %v1676, 4
  %v1680 = vshrl.u32 %v1172, 16
  %v1682 = vrot.slane %v1680, 5
  %v1683 = vshll.u32 %v1172, 16
  %v1685 = vrot.slane %v1683, 6
  %v1686 = vor.u32 %v1682, %v1685
  %v1687 = vsel %vm1491, %v1678, %v1686
  %v1689 = vshrl.u32 %v1173, 16
  %v1691 = vrot.slane %v1689, 5
  %v1692 = vshll.u32 %v1173, 16
  %v1694 = vrot.slane %v1692, 6
  %v1695 = vor.u32 %v1691, %v1694
  %v1696 = vrot.slane %v1695, 4
  %v1698 = vshrl.u32 %v1174, 16
  %v1700 = vrot.slane %v1698, 5
  %v1701 = vshll.u32 %v1174, 16
  %v1703 = vrot.slane %v1701, 6
  %v1704 = vor.u32 %v1700, %v1703
  %v1705 = vsel %vm1491, %v1696, %v1704
  %v1706 = vrot.slane %v1704, 4
  %v1708 = vshrl.u32 %v1175, 16
  %v1710 = vrot.slane %v1708, 5
  %v1711 = vshll.u32 %v1175, 16
  %v1713 = vrot.slane %v1711, 6
  %v1714 = vor.u32 %v1710, %v1713
  %v1715 = vsel %vm1491, %v1706, %v1714
  %s1716 = scalar_lea.vmem %s3, 16
  %v1717 = vld [vmem:[%s1716] sm:$0xf]
  %v1718 = vld [vmem:[%s1716 + $0x4] sm:$0xf]
  %v1719 = vld [vmem:[%s1716 + $0x8] sm:$0xf]
  %v1720 = vld [vmem:[%s1716 + $0xc] sm:$0xf]
  %v1721 = vunpack.c.l.b16 %v1509
  %v1722 = vunpack.c.l.b16 %v1519
  %v1723 = vunpack.c.l.b16 %v1537
  %v1724 = vunpack.c.l.b16 %v1547
  %v1725 = vunpack.c.l.b16 %v1565
  %v1726 = vunpack.c.l.b16 %v1575
  %v1727 = vunpack.c.l.b16 %v1593
  %v1728 = vunpack.c.l.b16 %v1603
  %v1729 = vunpack.c.l.b16 %v1621
  %v1730 = vunpack.c.l.b16 %v1631
  %v1731 = vunpack.c.l.b16 %v1649
  %v1732 = vunpack.c.l.b16 %v1659
  %v1733 = vunpack.c.l.b16 %v1677
  %v1734 = vunpack.c.l.b16 %v1687
  %v1735 = vunpack.c.l.b16 %v1705
  %v1736 = vunpack.c.l.b16 %v1715
  %v1737 = vpack.c.b16 %v1722, %v1721
  %v1738 = vpack.c.b16 %v1724, %v1723
  %v1739 = vpack.c.b16 %v1726, %v1725
  %v1740 = vpack.c.b16 %v1728, %v1727
  %v1741 = vpack.c.b16 %v1730, %v1729
  %v1742 = vpack.c.b16 %v1732, %v1731
  %v1743 = vpack.c.b16 %v1734, %v1733
  %v1744 = vpack.c.b16 %v1736, %v1735
  %v1749 = vunpack.c.l.b16 %v1717
  %v1750 = vunpack.c.l.b16 %v1718
  %v1751 = vunpack.c.l.b16 %v1719
  %v1752 = vunpack.c.l.b16 %v1720
  %v1753 = vpack.c.b16 %v1750, %v1749
  %v1754 = vpack.c.b16 %v1752, %v1751
  %v1758 = vsel %vm1399, %v1737, 0
  %v1761 = vsel %vm1399, %v1738, 0
  %v1764 = vsel %vm1399, %v1739, 0
  %v1767 = vsel %vm1399, %v1740, 0
  %v1770 = vsel %vm1399, %v1741, 0
  %v1773 = vsel %vm1399, %v1742, 0
  %v1776 = vsel %vm1399, %v1743, 0
  %v1779 = vsel %vm1399, %v1744, 0
  %1781 = vmatpush.bf16.msra.mxu0 0
  %1782 = vmatpush.bf16.msra.mxu0 0
  %1783 = vmatpush.bf16.msra.mxu0 0
  %1784 = vmatpush.bf16.msra.mxu0 0
  %1785 = vmatpush.bf16.msra.mxu0 0
  %1786 = vmatpush.bf16.msra.mxu0 0
  %1787 = vmatpush.bf16.msra.mxu0 %v1754
  %1788 = vmatpush.bf16.msra.mxu0 %v1753
  %1789 = vmatmul.bf16.gmra.mxu0 %v1758
  %v1790 = vpop.f32.mrf.mxu0
  %v1791 = vadd.f32 0.0, %v1790
  %v1792 = vpop.f32.mrf.mxu0
  %v1793 = vadd.f32 0.0, %v1792
  %1794 = vmatmul.bf16.gmra.mxu0 %v1761
  %v1795 = vpop.f32.mrf.mxu0
  %v1796 = vadd.f32 0.0, %v1795
  %v1797 = vpop.f32.mrf.mxu0
  %v1798 = vadd.f32 0.0, %v1797
  %1799 = vmatmul.bf16.gmra.mxu0 %v1764
  %v1800 = vpop.f32.mrf.mxu0
  %v1801 = vadd.f32 0.0, %v1800
  %v1802 = vpop.f32.mrf.mxu0
  %v1803 = vadd.f32 0.0, %v1802
  %1804 = vmatmul.bf16.gmra.mxu0 %v1767
  %v1805 = vpop.f32.mrf.mxu0
  %v1806 = vadd.f32 0.0, %v1805
  %v1807 = vpop.f32.mrf.mxu0
  %v1808 = vadd.f32 0.0, %v1807
  %1809 = vmatmul.bf16.gmra.mxu0 %v1770
  %v1810 = vpop.f32.mrf.mxu0
  %v1811 = vadd.f32 0.0, %v1810
  %v1812 = vpop.f32.mrf.mxu0
  %v1813 = vadd.f32 0.0, %v1812
  %1814 = vmatmul.bf16.gmra.mxu0 %v1773
  %v1815 = vpop.f32.mrf.mxu0
  %v1816 = vadd.f32 0.0, %v1815
  %v1817 = vpop.f32.mrf.mxu0
  %v1818 = vadd.f32 0.0, %v1817
  %1819 = vmatmul.bf16.gmra.mxu0 %v1776
  %v1820 = vpop.f32.mrf.mxu0
  %v1821 = vadd.f32 0.0, %v1820
  %v1822 = vpop.f32.mrf.mxu0
  %v1823 = vadd.f32 0.0, %v1822
  %1824 = vmatmul.bf16.gmra.mxu0 %v1779
  %v1825 = vpop.f32.mrf.mxu0
  %v1826 = vadd.f32 0.0, %v1825
  %v1827 = vpop.f32.mrf.mxu0
  %v1828 = vadd.f32 0.0, %v1827
  %1829 = vdwg.mxu0
  %v1830 = vadd.f32 %v1473, %v1791
  %v1831 = vadd.f32 %v1474, %v1793
  %v1832 = vadd.f32 %v1475, %v1796
  %v1833 = vadd.f32 %v1476, %v1798
  %v1834 = vadd.f32 %v1477, %v1801
  %v1835 = vadd.f32 %v1478, %v1803
  %v1836 = vadd.f32 %v1479, %v1806
  %v1837 = vadd.f32 %v1480, %v1808
  %v1838 = vadd.f32 %v1481, %v1811
  %v1839 = vadd.f32 %v1482, %v1813
  %v1840 = vadd.f32 %v1483, %v1816
  %v1841 = vadd.f32 %v1484, %v1818
  %v1842 = vadd.f32 %v1485, %v1821
  %v1843 = vadd.f32 %v1486, %v1823
  %v1844 = vadd.f32 %v1487, %v1826
  %v1845 = vadd.f32 %v1488, %v1828
  %vm1846 = vcmask 1041408
  %vm1847 = vcmask 1045508
  %vm1848 = vmor %vm1846, %vm1847
  %v1849 = vrot.slane %v1152, 6
  %v1850 = vrot.slane %v1849, 4
  %v1851 = vrot.slane %v1153, 6
  %v1852 = vsel %vm1848, %v1850, %v1851
  %v1853 = vrot.slane %v1851, 4
  %v1854 = vrot.slane %v1154, 6
  %v1855 = vsel %vm1848, %v1853, %v1854
  %v1856 = vrot.slane %v1155, 6
  %v1857 = vrot.slane %v1856, 4
  %v1858 = vrot.slane %v1156, 6
  %v1859 = vsel %vm1848, %v1857, %v1858
  %v1860 = vrot.slane %v1858, 4
  %v1861 = vrot.slane %v1157, 6
  %v1862 = vsel %vm1848, %v1860, %v1861
  %v1863 = vrot.slane %v1158, 6
  %v1864 = vrot.slane %v1863, 4
  %v1865 = vrot.slane %v1159, 6
  %v1866 = vsel %vm1848, %v1864, %v1865
  %v1867 = vrot.slane %v1865, 4
  %v1868 = vrot.slane %v1160, 6
  %v1869 = vsel %vm1848, %v1867, %v1868
  %v1870 = vrot.slane %v1161, 6
  %v1871 = vrot.slane %v1870, 4
  %v1872 = vrot.slane %v1162, 6
  %v1873 = vsel %vm1848, %v1871, %v1872
  %v1874 = vrot.slane %v1872, 4
  %v1875 = vrot.slane %v1163, 6
  %v1876 = vsel %vm1848, %v1874, %v1875
  %v1877 = vrot.slane %v1164, 6
  %v1878 = vrot.slane %v1877, 4
  %v1879 = vrot.slane %v1165, 6
  %v1880 = vsel %vm1848, %v1878, %v1879
  %v1881 = vrot.slane %v1879, 4
  %v1882 = vrot.slane %v1166, 6
  %v1883 = vsel %vm1848, %v1881, %v1882
  %v1884 = vrot.slane %v1167, 6
  %v1885 = vrot.slane %v1884, 4
  %v1886 = vrot.slane %v1168, 6
  %v1887 = vsel %vm1848, %v1885, %v1886
  %v1888 = vrot.slane %v1886, 4
  %v1889 = vrot.slane %v1169, 6
  %v1890 = vsel %vm1848, %v1888, %v1889
  %v1891 = vrot.slane %v1170, 6
  %v1892 = vrot.slane %v1891, 4
  %v1893 = vrot.slane %v1171, 6
  %v1894 = vsel %vm1848, %v1892, %v1893
  %v1895 = vrot.slane %v1893, 4
  %v1896 = vrot.slane %v1172, 6
  %v1897 = vsel %vm1848, %v1895, %v1896
  %v1898 = vrot.slane %v1173, 6
  %v1899 = vrot.slane %v1898, 4
  %v1900 = vrot.slane %v1174, 6
  %v1901 = vsel %vm1848, %v1899, %v1900
  %v1902 = vrot.slane %v1900, 4
  %v1903 = vrot.slane %v1175, 6
  %v1904 = vsel %vm1848, %v1902, %v1903
  %s1905 = scalar_lea.vmem %s3, 32
  %v1906 = vld [vmem:[%s1905] sm:$0xf]
  %v1907 = vld [vmem:[%s1905 + $0x4] sm:$0xf]
  %v1908 = vld [vmem:[%s1905 + $0x8] sm:$0xf]
  %v1909 = vld [vmem:[%s1905 + $0xc] sm:$0xf]
  %v1910 = vunpack.c.l.b16 %v1852
  %v1911 = vunpack.c.l.b16 %v1855
  %v1912 = vunpack.c.l.b16 %v1859
  %v1913 = vunpack.c.l.b16 %v1862
  %v1914 = vunpack.c.l.b16 %v1866
  %v1915 = vunpack.c.l.b16 %v1869
  %v1916 = vunpack.c.l.b16 %v1873
  %v1917 = vunpack.c.l.b16 %v1876
  %v1918 = vunpack.c.l.b16 %v1880
  %v1919 = vunpack.c.l.b16 %v1883
  %v1920 = vunpack.c.l.b16 %v1887
  %v1921 = vunpack.c.l.b16 %v1890
  %v1922 = vunpack.c.l.b16 %v1894
  %v1923 = vunpack.c.l.b16 %v1897
  %v1924 = vunpack.c.l.b16 %v1901
  %v1925 = vunpack.c.l.b16 %v1904
  %v1926 = vpack.c.b16 %v1911, %v1910
  %v1927 = vpack.c.b16 %v1913, %v1912
  %v1928 = vpack.c.b16 %v1915, %v1914
  %v1929 = vpack.c.b16 %v1917, %v1916
  %v1930 = vpack.c.b16 %v1919, %v1918
  %v1931 = vpack.c.b16 %v1921, %v1920
  %v1932 = vpack.c.b16 %v1923, %v1922
  %v1933 = vpack.c.b16 %v1925, %v1924
  %v1938 = vunpack.c.l.b16 %v1906
  %v1939 = vunpack.c.l.b16 %v1907
  %v1940 = vunpack.c.l.b16 %v1908
  %v1941 = vunpack.c.l.b16 %v1909
  %v1942 = vpack.c.b16 %v1939, %v1938
  %v1943 = vpack.c.b16 %v1941, %v1940
  %v1947 = vsel %vm1399, %v1926, 0
  %v1950 = vsel %vm1399, %v1927, 0
  %v1953 = vsel %vm1399, %v1928, 0
  %v1956 = vsel %vm1399, %v1929, 0
  %v1959 = vsel %vm1399, %v1930, 0
  %v1962 = vsel %vm1399, %v1931, 0
  %v1965 = vsel %vm1399, %v1932, 0
  %v1968 = vsel %vm1399, %v1933, 0
  %1970 = vmatpush.bf16.msra.mxu0 0
  %1971 = vmatpush.bf16.msra.mxu0 0
  %1972 = vmatpush.bf16.msra.mxu0 0
  %1973 = vmatpush.bf16.msra.mxu0 0
  %1974 = vmatpush.bf16.msra.mxu0 0
  %1975 = vmatpush.bf16.msra.mxu0 0
  %1976 = vmatpush.bf16.msra.mxu0 %v1943
  %1977 = vmatpush.bf16.msra.mxu0 %v1942
  %1978 = vmatmul.bf16.gmra.mxu0 %v1947
  %v1979 = vpop.f32.mrf.mxu0
  %v1980 = vadd.f32 0.0, %v1979
  %v1981 = vpop.f32.mrf.mxu0
  %v1982 = vadd.f32 0.0, %v1981
  %1983 = vmatmul.bf16.gmra.mxu0 %v1950
  %v1984 = vpop.f32.mrf.mxu0
  %v1985 = vadd.f32 0.0, %v1984
  %v1986 = vpop.f32.mrf.mxu0
  %v1987 = vadd.f32 0.0, %v1986
  %1988 = vmatmul.bf16.gmra.mxu0 %v1953
  %v1989 = vpop.f32.mrf.mxu0
  %v1990 = vadd.f32 0.0, %v1989
  %v1991 = vpop.f32.mrf.mxu0
  %v1992 = vadd.f32 0.0, %v1991
  %1993 = vmatmul.bf16.gmra.mxu0 %v1956
  %v1994 = vpop.f32.mrf.mxu0
  %v1995 = vadd.f32 0.0, %v1994
  %v1996 = vpop.f32.mrf.mxu0
  %v1997 = vadd.f32 0.0, %v1996
  %1998 = vmatmul.bf16.gmra.mxu0 %v1959
  %v1999 = vpop.f32.mrf.mxu0
  %v2000 = vadd.f32 0.0, %v1999
  %v2001 = vpop.f32.mrf.mxu0
  %v2002 = vadd.f32 0.0, %v2001
  %2003 = vmatmul.bf16.gmra.mxu0 %v1962
  %v2004 = vpop.f32.mrf.mxu0
  %v2005 = vadd.f32 0.0, %v2004
  %v2006 = vpop.f32.mrf.mxu0
  %v2007 = vadd.f32 0.0, %v2006
  %2008 = vmatmul.bf16.gmra.mxu0 %v1965
  %v2009 = vpop.f32.mrf.mxu0
  %v2010 = vadd.f32 0.0, %v2009
  %v2011 = vpop.f32.mrf.mxu0
  %v2012 = vadd.f32 0.0, %v2011
  %2013 = vmatmul.bf16.gmra.mxu0 %v1968
  %v2014 = vpop.f32.mrf.mxu0
  %v2015 = vadd.f32 0.0, %v2014
  %v2016 = vpop.f32.mrf.mxu0
  %v2017 = vadd.f32 0.0, %v2016
  %2018 = vdwg.mxu0
  %v2019 = vadd.f32 %v1830, %v1980
  %v2020 = vadd.f32 %v1831, %v1982
  %v2021 = vadd.f32 %v1832, %v1985
  %v2022 = vadd.f32 %v1833, %v1987
  %v2023 = vadd.f32 %v1834, %v1990
  %v2024 = vadd.f32 %v1835, %v1992
  %v2025 = vadd.f32 %v1836, %v1995
  %v2026 = vadd.f32 %v1837, %v1997
  %v2027 = vadd.f32 %v1838, %v2000
  %v2028 = vadd.f32 %v1839, %v2002
  %v2029 = vadd.f32 %v1840, %v2005
  %v2030 = vadd.f32 %v1841, %v2007
  %v2031 = vadd.f32 %v1842, %v2010
  %v2032 = vadd.f32 %v1843, %v2012
  %v2033 = vadd.f32 %v1844, %v2015
  %v2034 = vadd.f32 %v1845, %v2017
  %vm2035 = vsmask.f32 1280
  %vm2036 = vsmask.f32 5392
  %vm2037 = vmor %vm2035, %vm2036
  %v2038 = vrot.slane %v1493, 6
  %v2039 = vrot.slane %v1496, 7
  %v2040 = vor.u32 %v2038, %v2039
  %v2041 = vrot.slane %v2040, 4
  %v2042 = vrot.slane %v1502, 6
  %v2043 = vrot.slane %v1505, 7
  %v2044 = vor.u32 %v2042, %v2043
  %v2045 = vsel %vm2037, %v2041, %v2044
  %v2046 = vrot.slane %v2044, 4
  %v2047 = vrot.slane %v1512, 6
  %v2048 = vrot.slane %v1515, 7
  %v2049 = vor.u32 %v2047, %v2048
  %v2050 = vsel %vm2037, %v2046, %v2049
  %v2051 = vrot.slane %v1521, 6
  %v2052 = vrot.slane %v1524, 7
  %v2053 = vor.u32 %v2051, %v2052
  %v2054 = vrot.slane %v2053, 4
  %v2055 = vrot.slane %v1530, 6
  %v2056 = vrot.slane %v1533, 7
  %v2057 = vor.u32 %v2055, %v2056
  %v2058 = vsel %vm2037, %v2054, %v2057
  %v2059 = vrot.slane %v2057, 4
  %v2060 = vrot.slane %v1540, 6
  %v2061 = vrot.slane %v1543, 7
  %v2062 = vor.u32 %v2060, %v2061
  %v2063 = vsel %vm2037, %v2059, %v2062
  %v2064 = vrot.slane %v1549, 6
  %v2065 = vrot.slane %v1552, 7
  %v2066 = vor.u32 %v2064, %v2065
  %v2067 = vrot.slane %v2066, 4
  %v2068 = vrot.slane %v1558, 6
  %v2069 = vrot.slane %v1561, 7
  %v2070 = vor.u32 %v2068, %v2069
  %v2071 = vsel %vm2037, %v2067, %v2070
  %v2072 = vrot.slane %v2070, 4
  %v2073 = vrot.slane %v1568, 6
  %v2074 = vrot.slane %v1571, 7
  %v2075 = vor.u32 %v2073, %v2074
  %v2076 = vsel %vm2037, %v2072, %v2075
  %v2077 = vrot.slane %v1577, 6
  %v2078 = vrot.slane %v1580, 7
  %v2079 = vor.u32 %v2077, %v2078
  %v2080 = vrot.slane %v2079, 4
  %v2081 = vrot.slane %v1586, 6
  %v2082 = vrot.slane %v1589, 7
  %v2083 = vor.u32 %v2081, %v2082
  %v2084 = vsel %vm2037, %v2080, %v2083
  %v2085 = vrot.slane %v2083, 4
  %v2086 = vrot.slane %v1596, 6
  %v2087 = vrot.slane %v1599, 7
  %v2088 = vor.u32 %v2086, %v2087
  %v2089 = vsel %vm2037, %v2085, %v2088
  %v2090 = vrot.slane %v1605, 6
  %v2091 = vrot.slane %v1608, 7
  %v2092 = vor.u32 %v2090, %v2091
  %v2093 = vrot.slane %v2092, 4
  %v2094 = vrot.slane %v1614, 6
  %v2095 = vrot.slane %v1617, 7
  %v2096 = vor.u32 %v2094, %v2095
  %v2097 = vsel %vm2037, %v2093, %v2096
  %v2098 = vrot.slane %v2096, 4
  %v2099 = vrot.slane %v1624, 6
  %v2100 = vrot.slane %v1627, 7
  %v2101 = vor.u32 %v2099, %v2100
  %v2102 = vsel %vm2037, %v2098, %v2101
  %v2103 = vrot.slane %v1633, 6
  %v2104 = vrot.slane %v1636, 7
  %v2105 = vor.u32 %v2103, %v2104
  %v2106 = vrot.slane %v2105, 4
  %v2107 = vrot.slane %v1642, 6
  %v2108 = vrot.slane %v1645, 7
  %v2109 = vor.u32 %v2107, %v2108
  %v2110 = vsel %vm2037, %v2106, %v2109
  %v2111 = vrot.slane %v2109, 4
  %v2112 = vrot.slane %v1652, 6
  %v2113 = vrot.slane %v1655, 7
  %v2114 = vor.u32 %v2112, %v2113
  %v2115 = vsel %vm2037, %v2111, %v2114
  %v2116 = vrot.slane %v1661, 6
  %v2117 = vrot.slane %v1664, 7
  %v2118 = vor.u32 %v2116, %v2117
  %v2119 = vrot.slane %v2118, 4
  %v2120 = vrot.slane %v1670, 6
  %v2121 = vrot.slane %v1673, 7
  %v2122 = vor.u32 %v2120, %v2121
  %v2123 = vsel %vm2037, %v2119, %v2122
  %v2124 = vrot.slane %v2122, 4
  %v2125 = vrot.slane %v1680, 6
  %v2126 = vrot.slane %v1683, 7
  %v2127 = vor.u32 %v2125, %v2126
  %v2128 = vsel %vm2037, %v2124, %v2127
  %v2129 = vrot.slane %v1689, 6
  %v2130 = vrot.slane %v1692, 7
  %v2131 = vor.u32 %v2129, %v2130
  %v2132 = vrot.slane %v2131, 4
  %v2133 = vrot.slane %v1698, 6
  %v2134 = vrot.slane %v1701, 7
  %v2135 = vor.u32 %v2133, %v2134
  %v2136 = vsel %vm2037, %v2132, %v2135
  %v2137 = vrot.slane %v2135, 4
  %v2138 = vrot.slane %v1708, 6
  %v2139 = vrot.slane %v1711, 7
  %v2140 = vor.u32 %v2138, %v2139
  %v2141 = vsel %vm2037, %v2137, %v2140
  %s2142 = scalar_lea.vmem %s3, 48
  %v2143 = vld [vmem:[%s2142] sm:$0xf]
  %v2144 = vld [vmem:[%s2142 + $0x4] sm:$0xf]
  %v2145 = vld [vmem:[%s2142 + $0x8] sm:$0xf]
  %v2146 = vld [vmem:[%s2142 + $0xc] sm:$0xf]
  %v2147 = vunpack.c.l.b16 %v2045
  %v2148 = vunpack.c.l.b16 %v2050
  %v2149 = vunpack.c.l.b16 %v2058
  %v2150 = vunpack.c.l.b16 %v2063
  %v2151 = vunpack.c.l.b16 %v2071
  %v2152 = vunpack.c.l.b16 %v2076
  %v2153 = vunpack.c.l.b16 %v2084
  %v2154 = vunpack.c.l.b16 %v2089
  %v2155 = vunpack.c.l.b16 %v2097
  %v2156 = vunpack.c.l.b16 %v2102
  %v2157 = vunpack.c.l.b16 %v2110
  %v2158 = vunpack.c.l.b16 %v2115
  %v2159 = vunpack.c.l.b16 %v2123
  %v2160 = vunpack.c.l.b16 %v2128
  %v2161 = vunpack.c.l.b16 %v2136
  %v2162 = vunpack.c.l.b16 %v2141
  %v2163 = vpack.c.b16 %v2148, %v2147
  %v2164 = vpack.c.b16 %v2150, %v2149
  %v2165 = vpack.c.b16 %v2152, %v2151
  %v2166 = vpack.c.b16 %v2154, %v2153
  %v2167 = vpack.c.b16 %v2156, %v2155
  %v2168 = vpack.c.b16 %v2158, %v2157
  %v2169 = vpack.c.b16 %v2160, %v2159
  %v2170 = vpack.c.b16 %v2162, %v2161
  %v2175 = vunpack.c.l.b16 %v2143
  %v2176 = vunpack.c.l.b16 %v2144
  %v2177 = vunpack.c.l.b16 %v2145
  %v2178 = vunpack.c.l.b16 %v2146
  %v2179 = vpack.c.b16 %v2176, %v2175
  %v2180 = vpack.c.b16 %v2178, %v2177
  %v2184 = vsel %vm1399, %v2163, 0
  %v2187 = vsel %vm1399, %v2164, 0
  %v2190 = vsel %vm1399, %v2165, 0
  %v2193 = vsel %vm1399, %v2166, 0
  %v2196 = vsel %vm1399, %v2167, 0
  %v2199 = vsel %vm1399, %v2168, 0
  %v2202 = vsel %vm1399, %v2169, 0
  %v2205 = vsel %vm1399, %v2170, 0
  %2207 = vmatpush.bf16.msra.mxu0 0
  %2208 = vmatpush.bf16.msra.mxu0 0
  %2209 = vmatpush.bf16.msra.mxu0 0
  %2210 = vmatpush.bf16.msra.mxu0 0
  %2211 = vmatpush.bf16.msra.mxu0 0
  %2212 = vmatpush.bf16.msra.mxu0 0
  %2213 = vmatpush.bf16.msra.mxu0 %v2180
  %2214 = vmatpush.bf16.msra.mxu0 %v2179
  %2215 = vmatmul.bf16.gmra.mxu0 %v2184
  %v2216 = vpop.f32.mrf.mxu0
  %v2217 = vadd.f32 0.0, %v2216
  %v2218 = vpop.f32.mrf.mxu0
  %v2219 = vadd.f32 0.0, %v2218
  %2220 = vmatmul.bf16.gmra.mxu0 %v2187
  %v2221 = vpop.f32.mrf.mxu0
  %v2222 = vadd.f32 0.0, %v2221
  %v2223 = vpop.f32.mrf.mxu0
  %v2224 = vadd.f32 0.0, %v2223
  %2225 = vmatmul.bf16.gmra.mxu0 %v2190
  %v2226 = vpop.f32.mrf.mxu0
  %v2227 = vadd.f32 0.0, %v2226
  %v2228 = vpop.f32.mrf.mxu0
  %v2229 = vadd.f32 0.0, %v2228
  %2230 = vmatmul.bf16.gmra.mxu0 %v2193
  %v2231 = vpop.f32.mrf.mxu0
  %v2232 = vadd.f32 0.0, %v2231
  %v2233 = vpop.f32.mrf.mxu0
  %v2234 = vadd.f32 0.0, %v2233
  %2235 = vmatmul.bf16.gmra.mxu0 %v2196
  %v2236 = vpop.f32.mrf.mxu0
  %v2237 = vadd.f32 0.0, %v2236
  %v2238 = vpop.f32.mrf.mxu0
  %v2239 = vadd.f32 0.0, %v2238
  %2240 = vmatmul.bf16.gmra.mxu0 %v2199
  %v2241 = vpop.f32.mrf.mxu0
  %v2242 = vadd.f32 0.0, %v2241
  %v2243 = vpop.f32.mrf.mxu0
  %v2244 = vadd.f32 0.0, %v2243
  %2245 = vmatmul.bf16.gmra.mxu0 %v2202
  %v2246 = vpop.f32.mrf.mxu0
  %v2247 = vadd.f32 0.0, %v2246
  %v2248 = vpop.f32.mrf.mxu0
  %v2249 = vadd.f32 0.0, %v2248
  %2250 = vmatmul.bf16.gmra.mxu0 %v2205
  %v2251 = vpop.f32.mrf.mxu0
  %v2252 = vadd.f32 0.0, %v2251
  %v2253 = vpop.f32.mrf.mxu0
  %v2254 = vadd.f32 0.0, %v2253
  %2255 = vdwg.mxu0
  %v2256 = vadd.f32 %v2019, %v2217
  %v2257 = vadd.f32 %v2020, %v2219
  %v2258 = vadd.f32 %v2021, %v2222
  %v2259 = vadd.f32 %v2022, %v2224
  %v2260 = vadd.f32 %v2023, %v2227
  %v2261 = vadd.f32 %v2024, %v2229
  %v2262 = vadd.f32 %v2025, %v2232
  %v2263 = vadd.f32 %v2026, %v2234
  %v2264 = vadd.f32 %v2027, %v2237
  %v2265 = vadd.f32 %v2028, %v2239
  %v2266 = vadd.f32 %v2029, %v2242
  %v2267 = vadd.f32 %v2030, %v2244
  %v2268 = vadd.f32 %v2031, %v2247
  %v2269 = vadd.f32 %v2032, %v2249
  %v2270 = vadd.f32 %v2033, %v2252
  %v2271 = vadd.f32 %v2034, %v2254
  %vm2272 = vcmask 1040384
  %vm2273 = vcmask 1044484
  %vm2274 = vmor %vm2272, %vm2273
  %v2275 = vrot.slane %v1152, 7
  %v2276 = vrot.slane %v2275, 4
  %v2277 = vrot.slane %v1153, 7
  %v2278 = vsel %vm2274, %v2276, %v2277
  %v2279 = vrot.slane %v2277, 4
  %v2280 = vrot.slane %v1154, 7
  %v2281 = vsel %vm2274, %v2279, %v2280
  %v2282 = vrot.slane %v1155, 7
  %v2283 = vrot.slane %v2282, 4
  %v2284 = vrot.slane %v1156, 7
  %v2285 = vsel %vm2274, %v2283, %v2284
  %v2286 = vrot.slane %v2284, 4
  %v2287 = vrot.slane %v1157, 7
  %v2288 = vsel %vm2274, %v2286, %v2287
  %v2289 = vrot.slane %v1158, 7
  %v2290 = vrot.slane %v2289, 4
  %v2291 = vrot.slane %v1159, 7
  %v2292 = vsel %vm2274, %v2290, %v2291
  %v2293 = vrot.slane %v2291, 4
  %v2294 = vrot.slane %v1160, 7
  %v2295 = vsel %vm2274, %v2293, %v2294
  %v2296 = vrot.slane %v1161, 7
  %v2297 = vrot.slane %v2296, 4
  %v2298 = vrot.slane %v1162, 7
  %v2299 = vsel %vm2274, %v2297, %v2298
  %v2300 = vrot.slane %v2298, 4
  %v2301 = vrot.slane %v1163, 7
  %v2302 = vsel %vm2274, %v2300, %v2301
  %v2303 = vrot.slane %v1164, 7
  %v2304 = vrot.slane %v2303, 4
  %v2305 = vrot.slane %v1165, 7
  %v2306 = vsel %vm2274, %v2304, %v2305
  %v2307 = vrot.slane %v2305, 4
  %v2308 = vrot.slane %v1166, 7
  %v2309 = vsel %vm2274, %v2307, %v2308
  %v2310 = vrot.slane %v1167, 7
  %v2311 = vrot.slane %v2310, 4
  %v2312 = vrot.slane %v1168, 7
  %v2313 = vsel %vm2274, %v2311, %v2312
  %v2314 = vrot.slane %v2312, 4
  %v2315 = vrot.slane %v1169, 7
  %v2316 = vsel %vm2274, %v2314, %v2315
  %v2317 = vrot.slane %v1170, 7
  %v2318 = vrot.slane %v2317, 4
  %v2319 = vrot.slane %v1171, 7
  %v2320 = vsel %vm2274, %v2318, %v2319
  %v2321 = vrot.slane %v2319, 4
  %v2322 = vrot.slane %v1172, 7
  %v2323 = vsel %vm2274, %v2321, %v2322
  %v2324 = vrot.slane %v1173, 7
  %v2325 = vrot.slane %v2324, 4
  %v2326 = vrot.slane %v1174, 7
  %v2327 = vsel %vm2274, %v2325, %v2326
  %v2328 = vrot.slane %v2326, 4
  %v2329 = vrot.slane %v1175, 7
  %v2330 = vsel %vm2274, %v2328, %v2329
  %s2331 = scalar_lea.vmem %s3, 64
  %v2332 = vld [vmem:[%s2331] sm:$0xf]
  %v2333 = vld [vmem:[%s2331 + $0x4] sm:$0xf]
  %v2334 = vld [vmem:[%s2331 + $0x8] sm:$0xf]
  %v2335 = vld [vmem:[%s2331 + $0xc] sm:$0xf]
  %v2336 = vunpack.c.l.b16 %v2278
  %v2337 = vunpack.c.l.b16 %v2281
  %v2338 = vunpack.c.l.b16 %v2285
  %v2339 = vunpack.c.l.b16 %v2288
  %v2340 = vunpack.c.l.b16 %v2292
  %v2341 = vunpack.c.l.b16 %v2295
  %v2342 = vunpack.c.l.b16 %v2299
  %v2343 = vunpack.c.l.b16 %v2302
  %v2344 = vunpack.c.l.b16 %v2306
  %v2345 = vunpack.c.l.b16 %v2309
  %v2346 = vunpack.c.l.b16 %v2313
  %v2347 = vunpack.c.l.b16 %v2316
  %v2348 = vunpack.c.l.b16 %v2320
  %v2349 = vunpack.c.l.b16 %v2323
  %v2350 = vunpack.c.l.b16 %v2327
  %v2351 = vunpack.c.l.b16 %v2330
  %v2352 = vpack.c.b16 %v2337, %v2336
  %v2353 = vpack.c.b16 %v2339, %v2338
  %v2354 = vpack.c.b16 %v2341, %v2340
  %v2355 = vpack.c.b16 %v2343, %v2342
  %v2356 = vpack.c.b16 %v2345, %v2344
  %v2357 = vpack.c.b16 %v2347, %v2346
  %v2358 = vpack.c.b16 %v2349, %v2348
  %v2359 = vpack.c.b16 %v2351, %v2350
  %v2364 = vunpack.c.l.b16 %v2332
  %v2365 = vunpack.c.l.b16 %v2333
  %v2366 = vunpack.c.l.b16 %v2334
  %v2367 = vunpack.c.l.b16 %v2335
  %v2368 = vpack.c.b16 %v2365, %v2364
  %v2369 = vpack.c.b16 %v2367, %v2366
  %v2373 = vsel %vm1399, %v2352, 0
  %v2376 = vsel %vm1399, %v2353, 0
  %v2379 = vsel %vm1399, %v2354, 0
  %v2382 = vsel %vm1399, %v2355, 0
  %v2385 = vsel %vm1399, %v2356, 0
  %v2388 = vsel %vm1399, %v2357, 0
  %v2391 = vsel %vm1399, %v2358, 0
  %v2394 = vsel %vm1399, %v2359, 0
  %2396 = vmatpush.bf16.msra.mxu0 0
  %2397 = vmatpush.bf16.msra.mxu0 0
  %2398 = vmatpush.bf16.msra.mxu0 0
  %2399 = vmatpush.bf16.msra.mxu0 0
  %2400 = vmatpush.bf16.msra.mxu0 0
  %2401 = vmatpush.bf16.msra.mxu0 0
  %2402 = vmatpush.bf16.msra.mxu0 %v2369
  %2403 = vmatpush.bf16.msra.mxu0 %v2368
  %2404 = vmatmul.bf16.gmra.mxu0 %v2373
  %v2405 = vpop.f32.mrf.mxu0
  %v2406 = vadd.f32 0.0, %v2405
  %v2407 = vpop.f32.mrf.mxu0
  %v2408 = vadd.f32 0.0, %v2407
  %2409 = vmatmul.bf16.gmra.mxu0 %v2376
  %v2410 = vpop.f32.mrf.mxu0
  %v2411 = vadd.f32 0.0, %v2410
  %v2412 = vpop.f32.mrf.mxu0
  %v2413 = vadd.f32 0.0, %v2412
  %2414 = vmatmul.bf16.gmra.mxu0 %v2379
  %v2415 = vpop.f32.mrf.mxu0
  %v2416 = vadd.f32 0.0, %v2415
  %v2417 = vpop.f32.mrf.mxu0
  %v2418 = vadd.f32 0.0, %v2417
  %2419 = vmatmul.bf16.gmra.mxu0 %v2382
  %v2420 = vpop.f32.mrf.mxu0
  %v2421 = vadd.f32 0.0, %v2420
  %v2422 = vpop.f32.mrf.mxu0
  %v2423 = vadd.f32 0.0, %v2422
  %2424 = vmatmul.bf16.gmra.mxu0 %v2385
  %v2425 = vpop.f32.mrf.mxu0
  %v2426 = vadd.f32 0.0, %v2425
  %v2427 = vpop.f32.mrf.mxu0
  %v2428 = vadd.f32 0.0, %v2427
  %2429 = vmatmul.bf16.gmra.mxu0 %v2388
  %v2430 = vpop.f32.mrf.mxu0
  %v2431 = vadd.f32 0.0, %v2430
  %v2432 = vpop.f32.mrf.mxu0
  %v2433 = vadd.f32 0.0, %v2432
  %2434 = vmatmul.bf16.gmra.mxu0 %v2391
  %v2435 = vpop.f32.mrf.mxu0
  %v2436 = vadd.f32 0.0, %v2435
  %v2437 = vpop.f32.mrf.mxu0
  %v2438 = vadd.f32 0.0, %v2437
  %2439 = vmatmul.bf16.gmra.mxu0 %v2394
  %v2440 = vpop.f32.mrf.mxu0
  %v2441 = vadd.f32 0.0, %v2440
  %v2442 = vpop.f32.mrf.mxu0
  %v2443 = vadd.f32 0.0, %v2442
  %2444 = vdwg.mxu0
  %v2445 = vadd.f32 %v2256, %v2406
  %v2446 = vadd.f32 %v2257, %v2408
  %v2447 = vadd.f32 %v2258, %v2411
  %v2448 = vadd.f32 %v2259, %v2413
  %v2449 = vadd.f32 %v2260, %v2416
  %v2450 = vadd.f32 %v2261, %v2418
  %v2451 = vadd.f32 %v2262, %v2421
  %v2452 = vadd.f32 %v2263, %v2423
  %v2453 = vadd.f32 %v2264, %v2426
  %v2454 = vadd.f32 %v2265, %v2428
  %v2455 = vadd.f32 %v2266, %v2431
  %v2456 = vadd.f32 %v2267, %v2433
  %v2457 = vadd.f32 %v2268, %v2436
  %v2458 = vadd.f32 %v2269, %v2438
  %v2459 = vadd.f32 %v2270, %v2441
  %v2460 = vadd.f32 %v2271, %v2443
  %v2461 = vmax.f32 %v2445, 0.0
  %v2462 = vmax.f32 %v2446, 0.0
  %v2463 = vmax.f32 %v2447, 0.0
  %v2464 = vmax.f32 %v2448, 0.0
  %v2465 = vmax.f32 %v2449, 0.0
  %v2466 = vmax.f32 %v2450, 0.0
  %v2467 = vmax.f32 %v2451, 0.0
  %v2468 = vmax.f32 %v2452, 0.0
  %v2469 = vmax.f32 %v2453, 0.0
  %v2470 = vmax.f32 %v2454, 0.0
  %v2471 = vmax.f32 %v2455, 0.0
  %v2472 = vmax.f32 %v2456, 0.0
  %v2473 = vmax.f32 %v2457, 0.0
  %v2474 = vmax.f32 %v2458, 0.0
  %v2475 = vmax.f32 %v2459, 0.0
  %v2476 = vmax.f32 %v2460, 0.0
  %vm2477 = vcmp.lt.s32.totalorder %v1107, 16
  %vm2478 = vcmp.lt.s32.totalorder %v1108, 16
  %v2479 = vsel %vm2477, 1, 0
  %v2480 = vsel %vm2478, 1, 0
  %vm2481 = vcmp.eq.s32.totalorder %v2479, 1
  %vm2482 = vcmp.eq.s32.totalorder %v2480, 1
  %v2483 = vsel %vm2481, %v2461, 0.0
  %v2484 = vsel %vm2482, %v2462, 0.0
  %v2485 = vsel %vm2481, %v2463, 0.0
  %v2486 = vsel %vm2482, %v2464, 0.0
  %v2487 = vsel %vm2481, %v2465, 0.0
  %v2488 = vsel %vm2482, %v2466, 0.0
  %v2489 = vsel %vm2481, %v2467, 0.0
  %v2490 = vsel %vm2482, %v2468, 0.0
  %v2491 = vsel %vm2481, %v2469, 0.0
  %v2492 = vsel %vm2482, %v2470, 0.0
  %v2493 = vsel %vm2481, %v2471, 0.0
  %v2494 = vsel %vm2482, %v2472, 0.0
  %v2495 = vsel %vm2481, %v2473, 0.0
  %v2496 = vsel %vm2482, %v2474, 0.0
  %v2497 = vsel %vm2481, %v2475, 0.0
  %v2498 = vsel %vm2482, %v2476, 0.0
  %v2499 = vld [vmem:[#allocation2] sm:$0xff]
  %v2500 = vsel %vm1399, %v2483, 0.0
  %v2501 = vsel %vm1399, %v2484, 0.0
  %v2502 = vadd.f32 %v2500, %v2501
  %v2503 = vrot.slane %v2502, 4
  %v2504 = vadd.f32 %v2502, %v2503
  %v2505 = vrot.slane %v2504, 2
  %v2506 = vadd.f32 %v2504, %v2505
  %v2507 = vrot.slane %v2506, 1
  %v2508 = vadd.f32 %v2506, %v2507
  %v2509 = vsel %vm1399, %v2485, 0.0
  %v2510 = vsel %vm1399, %v2486, 0.0
  %v2511 = vadd.f32 %v2509, %v2510
  %v2512 = vrot.slane %v2511, 4
  %v2513 = vadd.f32 %v2511, %v2512
  %v2514 = vrot.slane %v2513, 2
  %v2515 = vadd.f32 %v2513, %v2514
  %v2516 = vrot.slane %v2515, 1
  %v2517 = vadd.f32 %v2515, %v2516
  %v2518 = vsel %vm1399, %v2487, 0.0
  %v2519 = vsel %vm1399, %v2488, 0.0
  %v2520 = vadd.f32 %v2518, %v2519
  %v2521 = vrot.slane %v2520, 4
  %v2522 = vadd.f32 %v2520, %v2521
  %v2523 = vrot.slane %v2522, 2
  %v2524 = vadd.f32 %v2522, %v2523
  %v2525 = vrot.slane %v2524, 1
  %v2526 = vadd.f32 %v2524, %v2525
  %v2527 = vsel %vm1399, %v2489, 0.0
  %v2528 = vsel %vm1399, %v2490, 0.0
  %v2529 = vadd.f32 %v2527, %v2528
  %v2530 = vrot.slane %v2529, 4
  %v2531 = vadd.f32 %v2529, %v2530
  %v2532 = vrot.slane %v2531, 2
  %v2533 = vadd.f32 %v2531, %v2532
  %v2534 = vrot.slane %v2533, 1
  %v2535 = vadd.f32 %v2533, %v2534
  %v2536 = vsel %vm1399, %v2491, 0.0
  %v2537 = vsel %vm1399, %v2492, 0.0
  %v2538 = vadd.f32 %v2536, %v2537
  %v2539 = vrot.slane %v2538, 4
  %v2540 = vadd.f32 %v2538, %v2539
  %v2541 = vrot.slane %v2540, 2
  %v2542 = vadd.f32 %v2540, %v2541
  %v2543 = vrot.slane %v2542, 1
  %v2544 = vadd.f32 %v2542, %v2543
  %v2545 = vsel %vm1399, %v2493, 0.0
  %v2546 = vsel %vm1399, %v2494, 0.0
  %v2547 = vadd.f32 %v2545, %v2546
  %v2548 = vrot.slane %v2547, 4
  %v2549 = vadd.f32 %v2547, %v2548
  %v2550 = vrot.slane %v2549, 2
  %v2551 = vadd.f32 %v2549, %v2550
  %v2552 = vrot.slane %v2551, 1
  %v2553 = vadd.f32 %v2551, %v2552
  %v2554 = vsel %vm1399, %v2495, 0.0
  %v2555 = vsel %vm1399, %v2496, 0.0
  %v2556 = vadd.f32 %v2554, %v2555
  %v2557 = vrot.slane %v2556, 4
  %v2558 = vadd.f32 %v2556, %v2557
  %v2559 = vrot.slane %v2558, 2
  %v2560 = vadd.f32 %v2558, %v2559
  %v2561 = vrot.slane %v2560, 1
  %v2562 = vadd.f32 %v2560, %v2561
  %v2563 = vsel %vm1399, %v2497, 0.0
  %v2564 = vsel %vm1399, %v2498, 0.0
  %v2565 = vadd.f32 %v2563, %v2564
  %v2566 = vrot.slane %v2565, 4
  %v2567 = vadd.f32 %v2565, %v2566
  %v2568 = vrot.slane %v2567, 2
  %v2569 = vadd.f32 %v2567, %v2568
  %v2570 = vrot.slane %v2569, 1
  %v2571 = vadd.f32 %v2569, %v2570
  %vm2580 = vcmask 1041409
  %v2581 = vsel %vm2580, %v2517, %v2508
  %vm2582 = vcmask 1042434
  %v2583 = vsel %vm2582, %v2526, %v2581
  %vm2584 = vcmask 1043459
  %v2585 = vsel %vm2584, %v2535, %v2583
  %vm2586 = vcmask 1044484
  %v2587 = vsel %vm2586, %v2544, %v2585
  %vm2588 = vcmask 1045509
  %v2589 = vsel %vm2588, %v2553, %v2587
  %vm2590 = vcmask 1046534
  %v2591 = vsel %vm2590, %v2562, %v2589
  %vm2592 = vcmask 1047559
  %v2593 = vsel %vm2592, %v2571, %v2591
  %v2595 = vadd.f32 %v2499, %v2593
  %2596 = vst.msk [vmem:[#allocation2] sm:$0xff] %vm1399, %v2595
  // Predicated region
  $region34: #{tpu_custom_call.1} parent=0 // pred_check
    %p2597 = pneg %p27
  $region35: #{tpu_custom_call.1} parent=0 // pred_check_branch
    %2599 = sbr.rel (%p2597) target = $region37
  $region36: #{tpu_custom_call.1} parent=0 // pred_region
    %v2600 = vld [vmem:[#allocation2] sm:$0xff]
    %v2601 = vmul.f32 %v2600, 0.0625
    %v2602 = vld [vmem:[%s5] sm:$0xff]
    %v2603 = vld [vmem:[%s5 + $0x8] sm:$0xff]
    %v2604 = vld [vmem:[%s5 + $0x10] sm:$0xff]
    %v2605 = vld [vmem:[%s5 + $0x18] sm:$0xff]
    %v2606 = vld [vmem:[%s6] sm:$0x1]
    %v2608 = vperm.slane %v2606, 0
    %v2611 = vsel %vm1399, %v2601, 0
    %2613 = vmatpush.msra.mxu0 0.0
    %2614 = vmatpush.msra.mxu0 0.0
    %2615 = vmatpush.msra.mxu0 0.0
    %2616 = vmatpush.msra.mxu0 0.0
    %2617 = vmatpush.msra.mxu0 0.0
    %2618 = vmatpush.msra.mxu0 0.0
    %2619 = vmatpush.msra.mxu0 0.0
    %2620 = vmatpush.msra.mxu0 0.0
    %2621 = vmatpush.msra.mxu0 0.0
    %2622 = vmatpush.msra.mxu0 0.0
    %2623 = vmatpush.msra.mxu0 0.0
    %2624 = vmatpush.msra.mxu0 0.0
    %2625 = vmatpush.msra.mxu0 %v2605
    %2626 = vmatpush.msra.mxu0 %v2604
    %2627 = vmatpush.msra.mxu0 %v2603
    %2628 = vmatpush.msra.mxu0 %v2602
    %2629 = vmatmul.f32.gmra.mxu0 %v2611
    %v2630 = vpop.f32.mrf.mxu0
    %v2631 = vadd.f32 %v2608, %v2630
    %2632 = vdwg.mxu0
    %2633 = vst.msk [vmem:[%s7] sm:$0xff] %vm709, %v2631
  $region37: #{tpu_custom_call.1} parent=0 // pred_fallthru
    _
  // Predicated region
  $region38: #{tpu_custom_call.1} parent=0 // pred_check
    _
  $region39: #{tpu_custom_call.1} parent=0 // pred_check_branch
    %2635 = sbr.rel (0) target = $region41
  $region40: #{tpu_custom_call.1} parent=0 // pred_region
    _
  $region41: #{tpu_custom_call.1} parent=0 // pred_fallthru
    _
  // Predicated region
  $region42: #{tpu_custom_call.1} parent=0 // pred_check
    _
  $region43: #{tpu_custom_call.1} parent=0 // pred_check_branch
    %2637 = sbr.rel (0) target = $region45
  $region44: #{tpu_custom_call.1} parent=0 // pred_region
    _
  $region45: #{tpu_custom_call.1} parent=0 // pred_fallthru
    _

</llo_original>
